<compile_context>
chip_gen: v7x
topology: tpu7x:2x2x1
jax: 0.10.0
libtpu: 0.0.40
codegen_flags: <defaults>
</compile_context>

<pallas_src>
import functools

import jax
import jax.numpy as jnp
from jax import lax
from jax.experimental import pallas as pl
from jax.experimental.pallas import tpu as pltpu


def _rup8(n):
    return (n + 7) & ~7


def _rup128(n):
    return max(128, ((n + 127) // 128) * 128)


# ----------------------------------------------------------------------------
# Pallas kernel: whole sequence + all layers in one invocation, scheduled as a
# wavefront over diagonals d = t + l.  One fused MXU matmul per diagonal.
# ----------------------------------------------------------------------------
def _rnn_wavefront_kernel(num_layers, hidden_size, xa_ref, hc0_ref, p_ref,
                          out_ref):
    L, H = num_layers, hidden_size
    G = 4 * H
    T = xa_ref.shape[0]
    Ia = xa_ref.shape[1]          # input_size + 1 (ones column folds b_ih0+b_hh0)
    OP = out_ref.shape[1]         # lane-padded output width (multiple of 128)

    # Static row offsets inside the packed parameter buffer (must match wrapper).
    r_fw = _rup8(Ia)
    r_fb = r_fw + _rup8((2 * L - 1) * H)
    r_wo = r_fb + 8

    # ---- one-time loads, hoisted out of the unrolled wavefront loop ---------
    xa = xa_ref[...]                                      # (T, I+1)
    wih0a = p_ref[0:Ia, 0:L * G]                          # (I+1, L*G)
    fw = p_ref[r_fw:r_fw + (2 * L - 1) * H, 0:L * G]      # ((2L-1)H, L*G)
    fb = p_ref[r_fb:r_fb + 1, 0:L * G]                    # (1, L*G)
    hc0 = hc0_ref[...]                                    # (2L, H)

    # Hoisted layer-0 input projection (bias folded via the ones column),
    # already padded to L*G lanes so it adds straight onto the fused gates.
    xproj = jnp.dot(xa, wih0a, preferred_element_type=jnp.float32)  # (T, L*G)

    # Lane mask selecting the cell-candidate ('g') gate of every layer.
    lane = lax.broadcasted_iota(jnp.int32, (1, L * G), 1)
    gpos = lane % G
    g_mask = (gpos >= 2 * H) & (gpos < 3 * H)

    # LSTM state carried in vregs.
    h = [hc0[l:l + 1, :] for l in range(L)]               # each (1, H)
    c = [hc0[L + l:L + l + 1, :] for l in range(L)]

    # ---- wavefront: T*L cells in T+L-1 serial diagonals ----------------------
    for d in range(T + L - 1):
        # LHS = [h_0, ..., h_{L-1}, h_0, ..., h_{L-2}] matches the fused RHS
        # layout: Whh_l on the first L blocks, Wih_l (deep input) on the rest.
        lhs = jnp.concatenate(h + h[:L - 1], axis=1)       # (1, (2L-1)*H)
        full = jnp.dot(lhs, fw, preferred_element_type=jnp.float32) + fb
        t_idx = min(d, T - 1)          # rows >= T only feed inactive (discarded) cells
        full = full + xproj[t_idx:t_idx + 1, :]

        # Single-tanh activation: sigmoid(x) = 0.5*(1 + tanh(x/2)).
        th = jnp.tanh(jnp.where(g_mask, full, 0.5 * full))
        act = jnp.where(g_mask, th, 0.5 * th + 0.5)

        # Commit only the cells active on this diagonal (static Python bounds).
        for l in range(max(0, d - T + 1), min(L - 1, d) + 1):
            a = act[:, l * G:(l + 1) * G]
            i_g = a[:, 0:H]
            f_g = a[:, H:2 * H]
            g_g = a[:, 2 * H:3 * H]
            o_g = a[:, 3 * H:4 * H]
            c_new = f_g * c[l] + i_g * g_g
            h[l] = o_g * jnp.tanh(c_new)
            c[l] = c_new

    # hidden2out + sigmoid on the final top-layer hidden state (lane-dense out).
    wo_w = p_ref[r_wo:r_wo + H, 0:OP]
    wo_b = p_ref[r_wo + H:r_wo + H + 1, 0:OP]
    logits = jnp.dot(h[L - 1], wo_w, preferred_element_type=jnp.float32) + wo_b
    out_ref[...] = jax.nn.sigmoid(logits).astype(out_ref.dtype)


# ----------------------------------------------------------------------------
# Wrapper: host-side weight packing + pallas_call
# ----------------------------------------------------------------------------
def rnn_forward(x, h0, c0, layer_params, w_out, b_out):
    """x: (T, input_size); h0,c0: (L, 1, H); returns (1, 1, output_size)."""
    L = len(layer_params)
    T, I = x.shape
    H = h0.shape[-1]
    O = w_out.shape[-1]
    G = 4 * H
    OP = _rup128(O)
    W = max(L * G, OP)
    f32 = jnp.float32

    # Augment x with a ones column so b_ih0 + b_hh0 folds into the hoisted
    # layer-0 input projection.
    xa = jnp.concatenate([x.astype(f32), jnp.ones((T, 1), f32)], axis=1)

    # Packed parameter buffer layout (rows, 8-aligned sections):
    #   [0 : I+1)              wih0 (augmented with bias row), layer-0 gate cols
    #   [r_fw : r_fw+(2L-1)H)  fused block-diag RHS: Whh_0..Whh_{L-1}, Wih_1..Wih_{L-1}
    #   [r_fb]                 fused bias row (deep-layer biases; layer-0 folded above)
    #   [r_wo : r_wo+H+1)      hidden2out weight (padded to OP lanes) + bias row
    r_fw = _rup8(I + 1)
    r_fb = r_fw + _rup8((2 * L - 1) * H)
    r_wo = r_fb + 8
    rows = r_wo + _rup8(H + 1)

    p = jnp.zeros((rows, W), f32)
    wih0, _, b0 = layer_params[0]
    p = p.at[0:I, 0:G].set(wih0)
    p = p.at[I, 0:G].set(jnp.reshape(b0, (-1,)))
    for l, (wih, whh, b) in enumerate(layer_params):
        p = p.at[r_fw + l * H:r_fw + (l + 1) * H, l * G:(l + 1) * G].set(whh)
        if l >= 1:
            p = p.at[r_fw + (L + l - 1) * H:r_fw + (L + l) * H,
                     l * G:(l + 1) * G].set(wih)
            p = p.at[r_fb, l * G:(l + 1) * G].set(jnp.reshape(b, (-1,)))
    p = p.at[r_wo:r_wo + H, 0:O].set(w_out)
    p = p.at[r_wo + H, 0:O].set(jnp.reshape(b_out, (-1,)))

    hc0 = jnp.concatenate([h0.reshape(L, H).astype(f32),
                           c0.reshape(L, H).astype(f32)], axis=0)

    kernel = functools.partial(_rnn_wavefront_kernel, L, H)
    out = pl.pallas_call(
        kernel,
        out_shape=jax.ShapeDtypeStruct((1, OP), f32),
        in_specs=[pl.BlockSpec(memory_space=pltpu.MemorySpace.VMEM)] * 3,
        out_specs=pl.BlockSpec(memory_space=pltpu.MemorySpace.VMEM),
    )(xa, hc0, p)

    # PyTorch module returns shape (1, 1, output_size) for the default branch.
    return out[:, :O].reshape(1, 1, O)


# ----------------------------------------------------------------------------
# Pure-JAX reference (mirrors torch.nn.LSTM cell math) for correctness check
# ----------------------------------------------------------------------------
def rnn_reference(x, h0, c0, layer_params, w_out, b_out):
    L = len(layer_params)
    H = h0.shape[-1]
    hp = lax.Precision.HIGHEST
    h = [h0[l] for l in range(L)]
    c = [c0[l] for l in range(L)]
    inp = x[0:1, :]
    for t in range(x.shape[0]):
        inp = x[t:t + 1, :]
        for l, (wih, whh, b) in enumerate(layer_params):
            gates = (jnp.dot(inp, wih, precision=hp)
                     + jnp.dot(h[l], whh, precision=hp) + b)
            i_g = jax.nn.sigmoid(gates[:, 0:H])
            f_g = jax.nn.sigmoid(gates[:, H:2 * H])
            g_g = jnp.tanh(gates[:, 2 * H:3 * H])
            o_g = jax.nn.sigmoid(gates[:, 3 * H:4 * H])
            c[l] = f_g * c[l] + i_g * g_g
            h[l] = o_g * jnp.tanh(c[l])
            inp = h[l]
    out = jax.nn.sigmoid(jnp.dot(inp, w_out, precision=hp) + b_out)
    return out.reshape(1, 1, -1)


# ----------------------------------------------------------------------------
# Deterministic parameter construction (PyTorch-style uniform init shapes)
# ----------------------------------------------------------------------------
def make_params(key, input_size, hidden_size, output_size, num_layers):
    k = 1.0 / jnp.sqrt(jnp.float32(hidden_size))
    layer_params = []
    for l in range(num_layers):
        in_dim = input_size if l == 0 else hidden_size
        key, k1, k2, k3, k4 = jax.random.split(key, 5)
        # stored transposed vs torch: (in_dim, 4H) / (H, 4H); gate order [i,f,g,o]
        wih = jax.random.uniform(k1, (in_dim, 4 * hidden_size),
                                 jnp.float32, -k, k)
        whh = jax.random.uniform(k2, (hidden_size, 4 * hidden_size),
                                 jnp.float32, -k, k)
        b_ih = jax.random.uniform(k3, (1, 4 * hidden_size), jnp.float32, -k, k)
        b_hh = jax.random.uniform(k4, (1, 4 * hidden_size), jnp.float32, -k, k)
        layer_params.append((wih, whh, b_ih + b_hh))
    key, k5, k6 = jax.random.split(key, 3)
    ko = 1.0 / jnp.sqrt(jnp.float32(hidden_size))
    w_out = jax.random.uniform(k5, (hidden_size, output_size),
                               jnp.float32, -ko, ko)
    b_out = jax.random.uniform(k6, (1, output_size), jnp.float32, -ko, ko)
    return key, layer_params, w_out, b_out


if __name__ == "__main__":
    input_size, hidden_size, output_size = 16, 32, 8
    num_layers, seq_len = 2, 8

    key = jax.random.PRNGKey(0)
    key, layer_params, w_out, b_out = make_params(
        key, input_size, hidden_size, output_size, num_layers)

    key, kx, kh, kc = jax.random.split(key, 4)
    x = jax.random.normal(kx, (seq_len, input_size), jnp.float32)
    # init_hidden(): torch.rand -> uniform [0, 1); deterministic here.
    h0 = jax.random.uniform(kh, (num_layers, 1, hidden_size), jnp.float32)
    c0 = jax.random.uniform(kc, (num_layers, 1, hidden_size), jnp.float32)

    out = rnn_forward(x, h0, c0, layer_params, w_out, b_out)
    out = jax.block_until_ready(out)

    ref = rnn_reference(x, h0, c0, layer_params, w_out, b_out)
    assert out.shape == (1, 1, output_size)
    assert jnp.allclose(out, ref, atol=1e-4, rtol=1e-4), (out, ref)

    print("KERNEL_OK")
</pallas_src>

<mosaic_0001>
module attributes {stable_mosaic.version = 11 : i64} {
  func.func @_rnn_wavefront_kernel(%arg0: memref<8x17xf32, #tpu.memory_space<vmem>>, %arg1: memref<4x32xf32, #tpu.memory_space<vmem>>, %arg2: memref<168x256xf32, #tpu.memory_space<vmem>>, %arg3: memref<1x128xf32, #tpu.memory_space<vmem>>) attributes {dimension_semantics = [], scalar_prefetch = 0 : i64, scratch_operands = 0 : i64, tpu.core_type = #tpu.core_type<tc>} {
    %c0 = arith.constant 0 : index
    %c0_0 = arith.constant 0 : index
    %0 = vector.load %arg0[%c0, %c0_0] : memref<8x17xf32, #tpu.memory_space<vmem>>, vector<8x17xf32>
    %c0_1 = arith.constant 0 : index
    %c0_2 = arith.constant 0 : index
    %1 = vector.load %arg2[%c0_1, %c0_2] : memref<168x256xf32, #tpu.memory_space<vmem>>, vector<17x256xf32>
    %c24 = arith.constant 24 : index
    %c0_3 = arith.constant 0 : index
    %2 = vector.load %arg2[%c24, %c0_3] : memref<168x256xf32, #tpu.memory_space<vmem>>, vector<96x256xf32>
    %c120 = arith.constant 120 : index
    %c0_4 = arith.constant 0 : index
    %3 = vector.load %arg2[%c120, %c0_4] : memref<168x256xf32, #tpu.memory_space<vmem>>, vector<1x256xf32>
    %c0_5 = arith.constant 0 : index
    %c0_6 = arith.constant 0 : index
    %4 = vector.load %arg1[%c0_5, %c0_6] : memref<4x32xf32, #tpu.memory_space<vmem>>, vector<4x32xf32>
    %cst = arith.constant dense<0.000000e+00> : vector<8x256xf32>
    %5 = tpu.matmul %0, %1, %cst {dimension_numbers = #tpu.dot_dimension_numbers<[1], [0], [0], [1], [0, 0, 1, 1], [], []>} : vector<8x17xf32>, vector<17x256xf32>, vector<8x256xf32> -> vector<8x256xf32>
    %6 = tpu.iota {dimensions = array<i32: 1>} : vector<1x256xi32>
    %c128_i32 = arith.constant 128 : i32
    %c0_i32 = arith.constant 0 : i32
    %7 = arith.cmpi eq, %c128_i32, %c0_i32 : i32
    %c1_i32 = arith.constant 1 : i32
    %8 = arith.select %7, %c1_i32, %c128_i32 : i32
    %9 = vector.broadcast %8 : i32 to vector<1x256xi32>
    %10 = arith.remsi %6, %9 : vector<1x256xi32>
    %c0_i32_7 = arith.constant 0 : i32
    %11 = vector.broadcast %c0_i32_7 : i32 to vector<1x256xi32>
    %12 = arith.cmpi ne, %10, %11 : vector<1x256xi32>
    %c0_i32_8 = arith.constant 0 : i32
    %13 = vector.broadcast %c0_i32_8 : i32 to vector<1x256xi32>
    %14 = arith.cmpi slt, %10, %13 : vector<1x256xi32>
    %c0_i32_9 = arith.constant 0 : i32
    %15 = arith.cmpi slt, %8, %c0_i32_9 : i32
    %16 = vector.broadcast %15 : i1 to vector<1x256xi1>
    %17 = vector.broadcast %16 : vector<1x256xi1> to vector<1x256xi1>
    %18 = arith.xori %14, %17 : vector<1x256xi1>
    %19 = arith.andi %18, %12 : vector<1x256xi1>
    %20 = vector.broadcast %8 : i32 to vector<1x256xi32>
    %21 = arith.addi %10, %20 : vector<1x256xi32>
    %22 = arith.select %19, %21, %10 : vector<1x256xi1>, vector<1x256xi32>
    %c64_i32 = arith.constant 64 : i32
    %23 = vector.broadcast %c64_i32 : i32 to vector<1x256xi32>
    %24 = arith.cmpi sge, %22, %23 : vector<1x256xi32>
    %c96_i32 = arith.constant 96 : i32
    %25 = vector.broadcast %c96_i32 : i32 to vector<1x256xi32>
    %26 = arith.cmpi slt, %22, %25 : vector<1x256xi32>
    %27 = arith.andi %24, %26 : vector<1x256xi1>
    %28 = vector.extract_strided_slice %4 {offsets = [0, 0], sizes = [1, 32], strides = [1, 1]} : vector<4x32xf32> to vector<1x32xf32>
    %29 = vector.extract_strided_slice %4 {offsets = [1, 0], sizes = [1, 32], strides = [1, 1]} : vector<4x32xf32> to vector<1x32xf32>
    %30 = vector.extract_strided_slice %4 {offsets = [2, 0], sizes = [1, 32], strides = [1, 1]} : vector<4x32xf32> to vector<1x32xf32>
    %31 = vector.extract_strided_slice %4 {offsets = [3, 0], sizes = [1, 32], strides = [1, 1]} : vector<4x32xf32> to vector<1x32xf32>
    %32 = tpu.concatenate %28, %29, %28 in 1 : vector<1x32xf32>, vector<1x32xf32>, vector<1x32xf32> -> vector<1x96xf32>
    %cst_10 = arith.constant dense<0.000000e+00> : vector<1x256xf32>
    %33 = tpu.matmul %32, %2, %cst_10 {dimension_numbers = #tpu.dot_dimension_numbers<[1], [0], [0], [1], [0, 0, 1, 1], [], []>} : vector<1x96xf32>, vector<96x256xf32>, vector<1x256xf32> -> vector<1x256xf32>
    %34 = arith.addf %33, %3 : vector<1x256xf32>
    %35 = vector.extract_strided_slice %5 {offsets = [0, 0], sizes = [1, 256], strides = [1, 1]} : vector<8x256xf32> to vector<1x256xf32>
    %36 = arith.addf %34, %35 : vector<1x256xf32>
    %cst_11 = arith.constant 5.000000e-01 : f32
    %37 = vector.broadcast %cst_11 : f32 to vector<1x256xf32>
    %38 = arith.mulf %37, %36 : vector<1x256xf32>
    %39 = arith.select %27, %36, %38 : vector<1x256xi1>, vector<1x256xf32>
    %40 = math.tanh %39 : vector<1x256xf32>
    %cst_12 = arith.constant 5.000000e-01 : f32
    %41 = vector.broadcast %cst_12 : f32 to vector<1x256xf32>
    %42 = arith.mulf %41, %40 : vector<1x256xf32>
    %cst_13 = arith.constant 5.000000e-01 : f32
    %43 = vector.broadcast %cst_13 : f32 to vector<1x256xf32>
    %44 = arith.addf %42, %43 : vector<1x256xf32>
    %45 = arith.select %27, %40, %44 : vector<1x256xi1>, vector<1x256xf32>
    %46 = vector.extract_strided_slice %45 {offsets = [0, 0], sizes = [1, 128], strides = [1, 1]} : vector<1x256xf32> to vector<1x128xf32>
    %47 = vector.extract_strided_slice %46 {offsets = [0, 0], sizes = [1, 32], strides = [1, 1]} : vector<1x128xf32> to vector<1x32xf32>
    %48 = vector.extract_strided_slice %46 {offsets = [0, 32], sizes = [1, 32], strides = [1, 1]} : vector<1x128xf32> to vector<1x32xf32>
    %49 = vector.extract_strided_slice %46 {offsets = [0, 64], sizes = [1, 32], strides = [1, 1]} : vector<1x128xf32> to vector<1x32xf32>
    %50 = vector.extract_strided_slice %46 {offsets = [0, 96], sizes = [1, 32], strides = [1, 1]} : vector<1x128xf32> to vector<1x32xf32>
    %51 = arith.mulf %48, %30 : vector<1x32xf32>
    %52 = arith.mulf %47, %49 : vector<1x32xf32>
    %53 = arith.addf %51, %52 : vector<1x32xf32>
    %54 = math.tanh %53 : vector<1x32xf32>
    %55 = arith.mulf %50, %54 : vector<1x32xf32>
    %56 = tpu.concatenate %55, %29, %55 in 1 : vector<1x32xf32>, vector<1x32xf32>, vector<1x32xf32> -> vector<1x96xf32>
    %cst_14 = arith.constant dense<0.000000e+00> : vector<1x256xf32>
    %57 = tpu.matmul %56, %2, %cst_14 {dimension_numbers = #tpu.dot_dimension_numbers<[1], [0], [0], [1], [0, 0, 1, 1], [], []>} : vector<1x96xf32>, vector<96x256xf32>, vector<1x256xf32> -> vector<1x256xf32>
    %58 = arith.addf %57, %3 : vector<1x256xf32>
    %59 = vector.extract_strided_slice %5 {offsets = [1, 0], sizes = [1, 256], strides = [1, 1]} : vector<8x256xf32> to vector<1x256xf32>
    %60 = arith.addf %58, %59 : vector<1x256xf32>
    %cst_15 = arith.constant 5.000000e-01 : f32
    %61 = vector.broadcast %cst_15 : f32 to vector<1x256xf32>
    %62 = arith.mulf %61, %60 : vector<1x256xf32>
    %63 = arith.select %27, %60, %62 : vector<1x256xi1>, vector<1x256xf32>
    %64 = math.tanh %63 : vector<1x256xf32>
    %cst_16 = arith.constant 5.000000e-01 : f32
    %65 = vector.broadcast %cst_16 : f32 to vector<1x256xf32>
    %66 = arith.mulf %65, %64 : vector<1x256xf32>
    %cst_17 = arith.constant 5.000000e-01 : f32
    %67 = vector.broadcast %cst_17 : f32 to vector<1x256xf32>
    %68 = arith.addf %66, %67 : vector<1x256xf32>
    %69 = arith.select %27, %64, %68 : vector<1x256xi1>, vector<1x256xf32>
    %70 = vector.extract_strided_slice %69 {offsets = [0, 0], sizes = [1, 128], strides = [1, 1]} : vector<1x256xf32> to vector<1x128xf32>
    %71 = vector.extract_strided_slice %70 {offsets = [0, 0], sizes = [1, 32], strides = [1, 1]} : vector<1x128xf32> to vector<1x32xf32>
    %72 = vector.extract_strided_slice %70 {offsets = [0, 32], sizes = [1, 32], strides = [1, 1]} : vector<1x128xf32> to vector<1x32xf32>
    %73 = vector.extract_strided_slice %70 {offsets = [0, 64], sizes = [1, 32], strides = [1, 1]} : vector<1x128xf32> to vector<1x32xf32>
    %74 = vector.extract_strided_slice %70 {offsets = [0, 96], sizes = [1, 32], strides = [1, 1]} : vector<1x128xf32> to vector<1x32xf32>
    %75 = arith.mulf %72, %53 : vector<1x32xf32>
    %76 = arith.mulf %71, %73 : vector<1x32xf32>
    %77 = arith.addf %75, %76 : vector<1x32xf32>
    %78 = math.tanh %77 : vector<1x32xf32>
    %79 = arith.mulf %74, %78 : vector<1x32xf32>
    %80 = vector.extract_strided_slice %69 {offsets = [0, 128], sizes = [1, 128], strides = [1, 1]} : vector<1x256xf32> to vector<1x128xf32>
    %81 = vector.extract_strided_slice %80 {offsets = [0, 0], sizes = [1, 32], strides = [1, 1]} : vector<1x128xf32> to vector<1x32xf32>
    %82 = vector.extract_strided_slice %80 {offsets = [0, 32], sizes = [1, 32], strides = [1, 1]} : vector<1x128xf32> to vector<1x32xf32>
    %83 = vector.extract_strided_slice %80 {offsets = [0, 64], sizes = [1, 32], strides = [1, 1]} : vector<1x128xf32> to vector<1x32xf32>
    %84 = vector.extract_strided_slice %80 {offsets = [0, 96], sizes = [1, 32], strides = [1, 1]} : vector<1x128xf32> to vector<1x32xf32>
    %85 = arith.mulf %82, %31 : vector<1x32xf32>
    %86 = arith.mulf %81, %83 : vector<1x32xf32>
    %87 = arith.addf %85, %86 : vector<1x32xf32>
    %88 = math.tanh %87 : vector<1x32xf32>
    %89 = arith.mulf %84, %88 : vector<1x32xf32>
    %90 = tpu.concatenate %79, %89, %79 in 1 : vector<1x32xf32>, vector<1x32xf32>, vector<1x32xf32> -> vector<1x96xf32>
    %cst_18 = arith.constant dense<0.000000e+00> : vector<1x256xf32>
    %91 = tpu.matmul %90, %2, %cst_18 {dimension_numbers = #tpu.dot_dimension_numbers<[1], [0], [0], [1], [0, 0, 1, 1], [], []>} : vector<1x96xf32>, vector<96x256xf32>, vector<1x256xf32> -> vector<1x256xf32>
    %92 = arith.addf %91, %3 : vector<1x256xf32>
    %93 = vector.extract_strided_slice %5 {offsets = [2, 0], sizes = [1, 256], strides = [1, 1]} : vector<8x256xf32> to vector<1x256xf32>
    %94 = arith.addf %92, %93 : vector<1x256xf32>
    %cst_19 = arith.constant 5.000000e-01 : f32
    %95 = vector.broadcast %cst_19 : f32 to vector<1x256xf32>
    %96 = arith.mulf %95, %94 : vector<1x256xf32>
    %97 = arith.select %27, %94, %96 : vector<1x256xi1>, vector<1x256xf32>
    %98 = math.tanh %97 : vector<1x256xf32>
    %cst_20 = arith.constant 5.000000e-01 : f32
    %99 = vector.broadcast %cst_20 : f32 to vector<1x256xf32>
    %100 = arith.mulf %99, %98 : vector<1x256xf32>
    %cst_21 = arith.constant 5.000000e-01 : f32
    %101 = vector.broadcast %cst_21 : f32 to vector<1x256xf32>
    %102 = arith.addf %100, %101 : vector<1x256xf32>
    %103 = arith.select %27, %98, %102 : vector<1x256xi1>, vector<1x256xf32>
    %104 = vector.extract_strided_slice %103 {offsets = [0, 0], sizes = [1, 128], strides = [1, 1]} : vector<1x256xf32> to vector<1x128xf32>
    %105 = vector.extract_strided_slice %104 {offsets = [0, 0], sizes = [1, 32], strides = [1, 1]} : vector<1x128xf32> to vector<1x32xf32>
    %106 = vector.extract_strided_slice %104 {offsets = [0, 32], sizes = [1, 32], strides = [1, 1]} : vector<1x128xf32> to vector<1x32xf32>
    %107 = vector.extract_strided_slice %104 {offsets = [0, 64], sizes = [1, 32], strides = [1, 1]} : vector<1x128xf32> to vector<1x32xf32>
    %108 = vector.extract_strided_slice %104 {offsets = [0, 96], sizes = [1, 32], strides = [1, 1]} : vector<1x128xf32> to vector<1x32xf32>
    %109 = arith.mulf %106, %77 : vector<1x32xf32>
    %110 = arith.mulf %105, %107 : vector<1x32xf32>
    %111 = arith.addf %109, %110 : vector<1x32xf32>
    %112 = math.tanh %111 : vector<1x32xf32>
    %113 = arith.mulf %108, %112 : vector<1x32xf32>
    %114 = vector.extract_strided_slice %103 {offsets = [0, 128], sizes = [1, 128], strides = [1, 1]} : vector<1x256xf32> to vector<1x128xf32>
    %115 = vector.extract_strided_slice %114 {offsets = [0, 0], sizes = [1, 32], strides = [1, 1]} : vector<1x128xf32> to vector<1x32xf32>
    %116 = vector.extract_strided_slice %114 {offsets = [0, 32], sizes = [1, 32], strides = [1, 1]} : vector<1x128xf32> to vector<1x32xf32>
    %117 = vector.extract_strided_slice %114 {offsets = [0, 64], sizes = [1, 32], strides = [1, 1]} : vector<1x128xf32> to vector<1x32xf32>
    %118 = vector.extract_strided_slice %114 {offsets = [0, 96], sizes = [1, 32], strides = [1, 1]} : vector<1x128xf32> to vector<1x32xf32>
    %119 = arith.mulf %116, %87 : vector<1x32xf32>
    %120 = arith.mulf %115, %117 : vector<1x32xf32>
    %121 = arith.addf %119, %120 : vector<1x32xf32>
    %122 = math.tanh %121 : vector<1x32xf32>
    %123 = arith.mulf %118, %122 : vector<1x32xf32>
    %124 = tpu.concatenate %113, %123, %113 in 1 : vector<1x32xf32>, vector<1x32xf32>, vector<1x32xf32> -> vector<1x96xf32>
    %cst_22 = arith.constant dense<0.000000e+00> : vector<1x256xf32>
    %125 = tpu.matmul %124, %2, %cst_22 {dimension_numbers = #tpu.dot_dimension_numbers<[1], [0], [0], [1], [0, 0, 1, 1], [], []>} : vector<1x96xf32>, vector<96x256xf32>, vector<1x256xf32> -> vector<1x256xf32>
    %126 = arith.addf %125, %3 : vector<1x256xf32>
    %127 = vector.extract_strided_slice %5 {offsets = [3, 0], sizes = [1, 256], strides = [1, 1]} : vector<8x256xf32> to vector<1x256xf32>
    %128 = arith.addf %126, %127 : vector<1x256xf32>
    %cst_23 = arith.constant 5.000000e-01 : f32
    %129 = vector.broadcast %cst_23 : f32 to vector<1x256xf32>
    %130 = arith.mulf %129, %128 : vector<1x256xf32>
    %131 = arith.select %27, %128, %130 : vector<1x256xi1>, vector<1x256xf32>
    %132 = math.tanh %131 : vector<1x256xf32>
    %cst_24 = arith.constant 5.000000e-01 : f32
    %133 = vector.broadcast %cst_24 : f32 to vector<1x256xf32>
    %134 = arith.mulf %133, %132 : vector<1x256xf32>
    %cst_25 = arith.constant 5.000000e-01 : f32
    %135 = vector.broadcast %cst_25 : f32 to vector<1x256xf32>
    %136 = arith.addf %134, %135 : vector<1x256xf32>
    %137 = arith.select %27, %132, %136 : vector<1x256xi1>, vector<1x256xf32>
    %138 = vector.extract_strided_slice %137 {offsets = [0, 0], sizes = [1, 128], strides = [1, 1]} : vector<1x256xf32> to vector<1x128xf32>
    %139 = vector.extract_strided_slice %138 {offsets = [0, 0], sizes = [1, 32], strides = [1, 1]} : vector<1x128xf32> to vector<1x32xf32>
    %140 = vector.extract_strided_slice %138 {offsets = [0, 32], sizes = [1, 32], strides = [1, 1]} : vector<1x128xf32> to vector<1x32xf32>
    %141 = vector.extract_strided_slice %138 {offsets = [0, 64], sizes = [1, 32], strides = [1, 1]} : vector<1x128xf32> to vector<1x32xf32>
    %142 = vector.extract_strided_slice %138 {offsets = [0, 96], sizes = [1, 32], strides = [1, 1]} : vector<1x128xf32> to vector<1x32xf32>
    %143 = arith.mulf %140, %111 : vector<1x32xf32>
    %144 = arith.mulf %139, %141 : vector<1x32xf32>
    %145 = arith.addf %143, %144 : vector<1x32xf32>
    %146 = math.tanh %145 : vector<1x32xf32>
    %147 = arith.mulf %142, %146 : vector<1x32xf32>
    %148 = vector.extract_strided_slice %137 {offsets = [0, 128], sizes = [1, 128], strides = [1, 1]} : vector<1x256xf32> to vector<1x128xf32>
    %149 = vector.extract_strided_slice %148 {offsets = [0, 0], sizes = [1, 32], strides = [1, 1]} : vector<1x128xf32> to vector<1x32xf32>
    %150 = vector.extract_strided_slice %148 {offsets = [0, 32], sizes = [1, 32], strides = [1, 1]} : vector<1x128xf32> to vector<1x32xf32>
    %151 = vector.extract_strided_slice %148 {offsets = [0, 64], sizes = [1, 32], strides = [1, 1]} : vector<1x128xf32> to vector<1x32xf32>
    %152 = vector.extract_strided_slice %148 {offsets = [0, 96], sizes = [1, 32], strides = [1, 1]} : vector<1x128xf32> to vector<1x32xf32>
    %153 = arith.mulf %150, %121 : vector<1x32xf32>
    %154 = arith.mulf %149, %151 : vector<1x32xf32>
    %155 = arith.addf %153, %154 : vector<1x32xf32>
    %156 = math.tanh %155 : vector<1x32xf32>
    %157 = arith.mulf %152, %156 : vector<1x32xf32>
    %158 = tpu.concatenate %147, %157, %147 in 1 : vector<1x32xf32>, vector<1x32xf32>, vector<1x32xf32> -> vector<1x96xf32>
    %cst_26 = arith.constant dense<0.000000e+00> : vector<1x256xf32>
    %159 = tpu.matmul %158, %2, %cst_26 {dimension_numbers = #tpu.dot_dimension_numbers<[1], [0], [0], [1], [0, 0, 1, 1], [], []>} : vector<1x96xf32>, vector<96x256xf32>, vector<1x256xf32> -> vector<1x256xf32>
    %160 = arith.addf %159, %3 : vector<1x256xf32>
    %161 = vector.extract_strided_slice %5 {offsets = [4, 0], sizes = [1, 256], strides = [1, 1]} : vector<8x256xf32> to vector<1x256xf32>
    %162 = arith.addf %160, %161 : vector<1x256xf32>
    %cst_27 = arith.constant 5.000000e-01 : f32
    %163 = vector.broadcast %cst_27 : f32 to vector<1x256xf32>
    %164 = arith.mulf %163, %162 : vector<1x256xf32>
    %165 = arith.select %27, %162, %164 : vector<1x256xi1>, vector<1x256xf32>
    %166 = math.tanh %165 : vector<1x256xf32>
    %cst_28 = arith.constant 5.000000e-01 : f32
    %167 = vector.broadcast %cst_28 : f32 to vector<1x256xf32>
    %168 = arith.mulf %167, %166 : vector<1x256xf32>
    %cst_29 = arith.constant 5.000000e-01 : f32
    %169 = vector.broadcast %cst_29 : f32 to vector<1x256xf32>
    %170 = arith.addf %168, %169 : vector<1x256xf32>
    %171 = arith.select %27, %166, %170 : vector<1x256xi1>, vector<1x256xf32>
    %172 = vector.extract_strided_slice %171 {offsets = [0, 0], sizes = [1, 128], strides = [1, 1]} : vector<1x256xf32> to vector<1x128xf32>
    %173 = vector.extract_strided_slice %172 {offsets = [0, 0], sizes = [1, 32], strides = [1, 1]} : vector<1x128xf32> to vector<1x32xf32>
    %174 = vector.extract_strided_slice %172 {offsets = [0, 32], sizes = [1, 32], strides = [1, 1]} : vector<1x128xf32> to vector<1x32xf32>
    %175 = vector.extract_strided_slice %172 {offsets = [0, 64], sizes = [1, 32], strides = [1, 1]} : vector<1x128xf32> to vector<1x32xf32>
    %176 = vector.extract_strided_slice %172 {offsets = [0, 96], sizes = [1, 32], strides = [1, 1]} : vector<1x128xf32> to vector<1x32xf32>
    %177 = arith.mulf %174, %145 : vector<1x32xf32>
    %178 = arith.mulf %173, %175 : vector<1x32xf32>
    %179 = arith.addf %177, %178 : vector<1x32xf32>
    %180 = math.tanh %179 : vector<1x32xf32>
    %181 = arith.mulf %176, %180 : vector<1x32xf32>
    %182 = vector.extract_strided_slice %171 {offsets = [0, 128], sizes = [1, 128], strides = [1, 1]} : vector<1x256xf32> to vector<1x128xf32>
    %183 = vector.extract_strided_slice %182 {offsets = [0, 0], sizes = [1, 32], strides = [1, 1]} : vector<1x128xf32> to vector<1x32xf32>
    %184 = vector.extract_strided_slice %182 {offsets = [0, 32], sizes = [1, 32], strides = [1, 1]} : vector<1x128xf32> to vector<1x32xf32>
    %185 = vector.extract_strided_slice %182 {offsets = [0, 64], sizes = [1, 32], strides = [1, 1]} : vector<1x128xf32> to vector<1x32xf32>
    %186 = vector.extract_strided_slice %182 {offsets = [0, 96], sizes = [1, 32], strides = [1, 1]} : vector<1x128xf32> to vector<1x32xf32>
    %187 = arith.mulf %184, %155 : vector<1x32xf32>
    %188 = arith.mulf %183, %185 : vector<1x32xf32>
    %189 = arith.addf %187, %188 : vector<1x32xf32>
    %190 = math.tanh %189 : vector<1x32xf32>
    %191 = arith.mulf %186, %190 : vector<1x32xf32>
    %192 = tpu.concatenate %181, %191, %181 in 1 : vector<1x32xf32>, vector<1x32xf32>, vector<1x32xf32> -> vector<1x96xf32>
    %cst_30 = arith.constant dense<0.000000e+00> : vector<1x256xf32>
    %193 = tpu.matmul %192, %2, %cst_30 {dimension_numbers = #tpu.dot_dimension_numbers<[1], [0], [0], [1], [0, 0, 1, 1], [], []>} : vector<1x96xf32>, vector<96x256xf32>, vector<1x256xf32> -> vector<1x256xf32>
    %194 = arith.addf %193, %3 : vector<1x256xf32>
    %195 = vector.extract_strided_slice %5 {offsets = [5, 0], sizes = [1, 256], strides = [1, 1]} : vector<8x256xf32> to vector<1x256xf32>
    %196 = arith.addf %194, %195 : vector<1x256xf32>
    %cst_31 = arith.constant 5.000000e-01 : f32
    %197 = vector.broadcast %cst_31 : f32 to vector<1x256xf32>
    %198 = arith.mulf %197, %196 : vector<1x256xf32>
    %199 = arith.select %27, %196, %198 : vector<1x256xi1>, vector<1x256xf32>
    %200 = math.tanh %199 : vector<1x256xf32>
    %cst_32 = arith.constant 5.000000e-01 : f32
    %201 = vector.broadcast %cst_32 : f32 to vector<1x256xf32>
    %202 = arith.mulf %201, %200 : vector<1x256xf32>
    %cst_33 = arith.constant 5.000000e-01 : f32
    %203 = vector.broadcast %cst_33 : f32 to vector<1x256xf32>
    %204 = arith.addf %202, %203 : vector<1x256xf32>
    %205 = arith.select %27, %200, %204 : vector<1x256xi1>, vector<1x256xf32>
    %206 = vector.extract_strided_slice %205 {offsets = [0, 0], sizes = [1, 128], strides = [1, 1]} : vector<1x256xf32> to vector<1x128xf32>
    %207 = vector.extract_strided_slice %206 {offsets = [0, 0], sizes = [1, 32], strides = [1, 1]} : vector<1x128xf32> to vector<1x32xf32>
    %208 = vector.extract_strided_slice %206 {offsets = [0, 32], sizes = [1, 32], strides = [1, 1]} : vector<1x128xf32> to vector<1x32xf32>
    %209 = vector.extract_strided_slice %206 {offsets = [0, 64], sizes = [1, 32], strides = [1, 1]} : vector<1x128xf32> to vector<1x32xf32>
    %210 = vector.extract_strided_slice %206 {offsets = [0, 96], sizes = [1, 32], strides = [1, 1]} : vector<1x128xf32> to vector<1x32xf32>
    %211 = arith.mulf %208, %179 : vector<1x32xf32>
    %212 = arith.mulf %207, %209 : vector<1x32xf32>
    %213 = arith.addf %211, %212 : vector<1x32xf32>
    %214 = math.tanh %213 : vector<1x32xf32>
    %215 = arith.mulf %210, %214 : vector<1x32xf32>
    %216 = vector.extract_strided_slice %205 {offsets = [0, 128], sizes = [1, 128], strides = [1, 1]} : vector<1x256xf32> to vector<1x128xf32>
    %217 = vector.extract_strided_slice %216 {offsets = [0, 0], sizes = [1, 32], strides = [1, 1]} : vector<1x128xf32> to vector<1x32xf32>
    %218 = vector.extract_strided_slice %216 {offsets = [0, 32], sizes = [1, 32], strides = [1, 1]} : vector<1x128xf32> to vector<1x32xf32>
    %219 = vector.extract_strided_slice %216 {offsets = [0, 64], sizes = [1, 32], strides = [1, 1]} : vector<1x128xf32> to vector<1x32xf32>
    %220 = vector.extract_strided_slice %216 {offsets = [0, 96], sizes = [1, 32], strides = [1, 1]} : vector<1x128xf32> to vector<1x32xf32>
    %221 = arith.mulf %218, %189 : vector<1x32xf32>
    %222 = arith.mulf %217, %219 : vector<1x32xf32>
    %223 = arith.addf %221, %222 : vector<1x32xf32>
    %224 = math.tanh %223 : vector<1x32xf32>
    %225 = arith.mulf %220, %224 : vector<1x32xf32>
    %226 = tpu.concatenate %215, %225, %215 in 1 : vector<1x32xf32>, vector<1x32xf32>, vector<1x32xf32> -> vector<1x96xf32>
    %cst_34 = arith.constant dense<0.000000e+00> : vector<1x256xf32>
    %227 = tpu.matmul %226, %2, %cst_34 {dimension_numbers = #tpu.dot_dimension_numbers<[1], [0], [0], [1], [0, 0, 1, 1], [], []>} : vector<1x96xf32>, vector<96x256xf32>, vector<1x256xf32> -> vector<1x256xf32>
    %228 = arith.addf %227, %3 : vector<1x256xf32>
    %229 = vector.extract_strided_slice %5 {offsets = [6, 0], sizes = [1, 256], strides = [1, 1]} : vector<8x256xf32> to vector<1x256xf32>
    %230 = arith.addf %228, %229 : vector<1x256xf32>
    %cst_35 = arith.constant 5.000000e-01 : f32
    %231 = vector.broadcast %cst_35 : f32 to vector<1x256xf32>
    %232 = arith.mulf %231, %230 : vector<1x256xf32>
    %233 = arith.select %27, %230, %232 : vector<1x256xi1>, vector<1x256xf32>
    %234 = math.tanh %233 : vector<1x256xf32>
    %cst_36 = arith.constant 5.000000e-01 : f32
    %235 = vector.broadcast %cst_36 : f32 to vector<1x256xf32>
    %236 = arith.mulf %235, %234 : vector<1x256xf32>
    %cst_37 = arith.constant 5.000000e-01 : f32
    %237 = vector.broadcast %cst_37 : f32 to vector<1x256xf32>
    %238 = arith.addf %236, %237 : vector<1x256xf32>
    %239 = arith.select %27, %234, %238 : vector<1x256xi1>, vector<1x256xf32>
    %240 = vector.extract_strided_slice %239 {offsets = [0, 0], sizes = [1, 128], strides = [1, 1]} : vector<1x256xf32> to vector<1x128xf32>
    %241 = vector.extract_strided_slice %240 {offsets = [0, 0], sizes = [1, 32], strides = [1, 1]} : vector<1x128xf32> to vector<1x32xf32>
    %242 = vector.extract_strided_slice %240 {offsets = [0, 32], sizes = [1, 32], strides = [1, 1]} : vector<1x128xf32> to vector<1x32xf32>
    %243 = vector.extract_strided_slice %240 {offsets = [0, 64], sizes = [1, 32], strides = [1, 1]} : vector<1x128xf32> to vector<1x32xf32>
    %244 = vector.extract_strided_slice %240 {offsets = [0, 96], sizes = [1, 32], strides = [1, 1]} : vector<1x128xf32> to vector<1x32xf32>
    %245 = arith.mulf %242, %213 : vector<1x32xf32>
    %246 = arith.mulf %241, %243 : vector<1x32xf32>
    %247 = arith.addf %245, %246 : vector<1x32xf32>
    %248 = math.tanh %247 : vector<1x32xf32>
    %249 = arith.mulf %244, %248 : vector<1x32xf32>
    %250 = vector.extract_strided_slice %239 {offsets = [0, 128], sizes = [1, 128], strides = [1, 1]} : vector<1x256xf32> to vector<1x128xf32>
    %251 = vector.extract_strided_slice %250 {offsets = [0, 0], sizes = [1, 32], strides = [1, 1]} : vector<1x128xf32> to vector<1x32xf32>
    %252 = vector.extract_strided_slice %250 {offsets = [0, 32], sizes = [1, 32], strides = [1, 1]} : vector<1x128xf32> to vector<1x32xf32>
    %253 = vector.extract_strided_slice %250 {offsets = [0, 64], sizes = [1, 32], strides = [1, 1]} : vector<1x128xf32> to vector<1x32xf32>
    %254 = vector.extract_strided_slice %250 {offsets = [0, 96], sizes = [1, 32], strides = [1, 1]} : vector<1x128xf32> to vector<1x32xf32>
    %255 = arith.mulf %252, %223 : vector<1x32xf32>
    %256 = arith.mulf %251, %253 : vector<1x32xf32>
    %257 = arith.addf %255, %256 : vector<1x32xf32>
    %258 = math.tanh %257 : vector<1x32xf32>
    %259 = arith.mulf %254, %258 : vector<1x32xf32>
    %260 = tpu.concatenate %249, %259, %249 in 1 : vector<1x32xf32>, vector<1x32xf32>, vector<1x32xf32> -> vector<1x96xf32>
    %cst_38 = arith.constant dense<0.000000e+00> : vector<1x256xf32>
    %261 = tpu.matmul %260, %2, %cst_38 {dimension_numbers = #tpu.dot_dimension_numbers<[1], [0], [0], [1], [0, 0, 1, 1], [], []>} : vector<1x96xf32>, vector<96x256xf32>, vector<1x256xf32> -> vector<1x256xf32>
    %262 = arith.addf %261, %3 : vector<1x256xf32>
    %263 = vector.extract_strided_slice %5 {offsets = [7, 0], sizes = [1, 256], strides = [1, 1]} : vector<8x256xf32> to vector<1x256xf32>
    %264 = arith.addf %262, %263 : vector<1x256xf32>
    %cst_39 = arith.constant 5.000000e-01 : f32
    %265 = vector.broadcast %cst_39 : f32 to vector<1x256xf32>
    %266 = arith.mulf %265, %264 : vector<1x256xf32>
    %267 = arith.select %27, %264, %266 : vector<1x256xi1>, vector<1x256xf32>
    %268 = math.tanh %267 : vector<1x256xf32>
    %cst_40 = arith.constant 5.000000e-01 : f32
    %269 = vector.broadcast %cst_40 : f32 to vector<1x256xf32>
    %270 = arith.mulf %269, %268 : vector<1x256xf32>
    %cst_41 = arith.constant 5.000000e-01 : f32
    %271 = vector.broadcast %cst_41 : f32 to vector<1x256xf32>
    %272 = arith.addf %270, %271 : vector<1x256xf32>
    %273 = arith.select %27, %268, %272 : vector<1x256xi1>, vector<1x256xf32>
    %274 = vector.extract_strided_slice %273 {offsets = [0, 0], sizes = [1, 128], strides = [1, 1]} : vector<1x256xf32> to vector<1x128xf32>
    %275 = vector.extract_strided_slice %274 {offsets = [0, 0], sizes = [1, 32], strides = [1, 1]} : vector<1x128xf32> to vector<1x32xf32>
    %276 = vector.extract_strided_slice %274 {offsets = [0, 32], sizes = [1, 32], strides = [1, 1]} : vector<1x128xf32> to vector<1x32xf32>
    %277 = vector.extract_strided_slice %274 {offsets = [0, 64], sizes = [1, 32], strides = [1, 1]} : vector<1x128xf32> to vector<1x32xf32>
    %278 = vector.extract_strided_slice %274 {offsets = [0, 96], sizes = [1, 32], strides = [1, 1]} : vector<1x128xf32> to vector<1x32xf32>
    %279 = arith.mulf %276, %247 : vector<1x32xf32>
    %280 = arith.mulf %275, %277 : vector<1x32xf32>
    %281 = arith.addf %279, %280 : vector<1x32xf32>
    %282 = math.tanh %281 : vector<1x32xf32>
    %283 = arith.mulf %278, %282 : vector<1x32xf32>
    %284 = vector.extract_strided_slice %273 {offsets = [0, 128], sizes = [1, 128], strides = [1, 1]} : vector<1x256xf32> to vector<1x128xf32>
    %285 = vector.extract_strided_slice %284 {offsets = [0, 0], sizes = [1, 32], strides = [1, 1]} : vector<1x128xf32> to vector<1x32xf32>
    %286 = vector.extract_strided_slice %284 {offsets = [0, 32], sizes = [1, 32], strides = [1, 1]} : vector<1x128xf32> to vector<1x32xf32>
    %287 = vector.extract_strided_slice %284 {offsets = [0, 64], sizes = [1, 32], strides = [1, 1]} : vector<1x128xf32> to vector<1x32xf32>
    %288 = vector.extract_strided_slice %284 {offsets = [0, 96], sizes = [1, 32], strides = [1, 1]} : vector<1x128xf32> to vector<1x32xf32>
    %289 = arith.mulf %286, %257 : vector<1x32xf32>
    %290 = arith.mulf %285, %287 : vector<1x32xf32>
    %291 = arith.addf %289, %290 : vector<1x32xf32>
    %292 = math.tanh %291 : vector<1x32xf32>
    %293 = arith.mulf %288, %292 : vector<1x32xf32>
    %294 = tpu.concatenate %283, %293, %283 in 1 : vector<1x32xf32>, vector<1x32xf32>, vector<1x32xf32> -> vector<1x96xf32>
    %cst_42 = arith.constant dense<0.000000e+00> : vector<1x256xf32>
    %295 = tpu.matmul %294, %2, %cst_42 {dimension_numbers = #tpu.dot_dimension_numbers<[1], [0], [0], [1], [0, 0, 1, 1], [], []>} : vector<1x96xf32>, vector<96x256xf32>, vector<1x256xf32> -> vector<1x256xf32>
    %296 = arith.addf %295, %3 : vector<1x256xf32>
    %297 = vector.extract_strided_slice %5 {offsets = [7, 0], sizes = [1, 256], strides = [1, 1]} : vector<8x256xf32> to vector<1x256xf32>
    %298 = arith.addf %296, %297 : vector<1x256xf32>
    %cst_43 = arith.constant 5.000000e-01 : f32
    %299 = vector.broadcast %cst_43 : f32 to vector<1x256xf32>
    %300 = arith.mulf %299, %298 : vector<1x256xf32>
    %301 = arith.select %27, %298, %300 : vector<1x256xi1>, vector<1x256xf32>
    %302 = math.tanh %301 : vector<1x256xf32>
    %cst_44 = arith.constant 5.000000e-01 : f32
    %303 = vector.broadcast %cst_44 : f32 to vector<1x256xf32>
    %304 = arith.mulf %303, %302 : vector<1x256xf32>
    %cst_45 = arith.constant 5.000000e-01 : f32
    %305 = vector.broadcast %cst_45 : f32 to vector<1x256xf32>
    %306 = arith.addf %304, %305 : vector<1x256xf32>
    %307 = arith.select %27, %302, %306 : vector<1x256xi1>, vector<1x256xf32>
    %308 = vector.extract_strided_slice %307 {offsets = [0, 128], sizes = [1, 128], strides = [1, 1]} : vector<1x256xf32> to vector<1x128xf32>
    %309 = vector.extract_strided_slice %308 {offsets = [0, 0], sizes = [1, 32], strides = [1, 1]} : vector<1x128xf32> to vector<1x32xf32>
    %310 = vector.extract_strided_slice %308 {offsets = [0, 32], sizes = [1, 32], strides = [1, 1]} : vector<1x128xf32> to vector<1x32xf32>
    %311 = vector.extract_strided_slice %308 {offsets = [0, 64], sizes = [1, 32], strides = [1, 1]} : vector<1x128xf32> to vector<1x32xf32>
    %312 = vector.extract_strided_slice %308 {offsets = [0, 96], sizes = [1, 32], strides = [1, 1]} : vector<1x128xf32> to vector<1x32xf32>
    %313 = arith.mulf %310, %291 : vector<1x32xf32>
    %314 = arith.mulf %309, %311 : vector<1x32xf32>
    %315 = arith.addf %313, %314 : vector<1x32xf32>
    %316 = math.tanh %315 : vector<1x32xf32>
    %317 = arith.mulf %312, %316 : vector<1x32xf32>
    %c128 = arith.constant 128 : index
    %c0_46 = arith.constant 0 : index
    %318 = vector.load %arg2[%c128, %c0_46] : memref<168x256xf32, #tpu.memory_space<vmem>>, vector<32x128xf32>
    %c160 = arith.constant 160 : index
    %c0_47 = arith.constant 0 : index
    %319 = vector.load %arg2[%c160, %c0_47] : memref<168x256xf32, #tpu.memory_space<vmem>>, vector<1x128xf32>
    %cst_48 = arith.constant dense<0.000000e+00> : vector<1x128xf32>
    %320 = tpu.matmul %317, %318, %cst_48 {dimension_numbers = #tpu.dot_dimension_numbers<[1], [0], [0], [1], [0, 0, 1, 1], [], []>} : vector<1x32xf32>, vector<32x128xf32>, vector<1x128xf32> -> vector<1x128xf32>
    %321 = arith.addf %320, %319 : vector<1x128xf32>
    %322 = arith.negf %321 : vector<1x128xf32>
    %323 = math.exp %322 : vector<1x128xf32>
    %cst_49 = arith.constant 1.000000e+00 : f32
    %324 = vector.broadcast %cst_49 : f32 to vector<1x128xf32>
    %325 = arith.addf %324, %323 : vector<1x128xf32>
    %326 = arith.divf %324, %325 : vector<1x128xf32>
    %c0_50 = arith.constant 0 : index
    %c0_51 = arith.constant 0 : index
    %327 = vector.load %arg3[%c0_50, %c0_51] : memref<1x128xf32, #tpu.memory_space<vmem>>, vector<1x128xf32>
    tpu.vector_store %arg3[%c0_50, %c0_51], %326 {strides = array<i32>} : memref<1x128xf32, #tpu.memory_space<vmem>>, vector<1x128xf32>,
    return
  }
}

</mosaic_0001>

<llo_original>
// kernel: tpu_custom_call.1
$region0: #{tpu_custom_call.1}
  #allocation0 [shape = 'u32[]', space=smem, size = 0x4, offset = 0x4, fixed_abs, tag = 'smem constant byte address 0x4 - core index']
  #allocation1 [shape = 'u32[144,128]{1,0:T(1,128)}', space=vmem, size = 0x12000, scoped, tag = 'internal scratch']
  %s0 = inlined_call_operand.hbm [shape: f32[8,17], index: 0, kind: input, shape index: {}]
  %s1 = inlined_call_operand.hbm [shape: f32[4,32], index: 1, kind: input, shape index: {}]
  %s2 = inlined_call_operand.hbm [shape: f32[168,256], index: 2, kind: input, shape index: {}]
  %s3 = inlined_call_operand.hbm [shape: f32[1,128], index: 3, kind: output, shape index: {}]
  %s4 = sld [smem:[#allocation0]]
  $region34: #{tpu_custom_call.1} parent=0
    _
  %s6 = ssub.s32 1, %s4
  %s7 = scalar_select 0, %s6, %s4
  $region1: #{tpu_custom_call.1} parent=0
    #allocation2 [shape = 'u8[4096]{0}', space=vmem, size = 0x1000, scoped, tag = 'input window, operand 0, single buffered']
    #allocation3 [shape = 's32[1]{0}', space=sflag, size = 0x4, scoped, tag = 'scoped memory for tpu_custom_call.1']
    #allocation4 [shape = 's32[1]{0}', space=sflag, size = 0x4, scoped, tag = 'scoped memory for tpu_custom_call.1']
    #allocation5 [shape = 'u8[2048]{0}', space=vmem, size = 0x800, scoped, tag = 'input window, operand 1, single buffered']
    #allocation6 [shape = 's32[1]{0}', space=sflag, size = 0x4, scoped, tag = 'scoped memory for tpu_custom_call.1']
    #allocation7 [shape = 'u8[172032]{0}', space=vmem, size = 0x2a000, scoped, tag = 'input window, operand 2, single buffered']
    #allocation8 [shape = 'u8[512]{0}', space=vmem, size = 0x400, scoped, tag = 'output window, operand 0, single buffered']
    %8 = vsyncpa [#allocation3], 0
    %9 = vsyncpa [#allocation6], 0
    %10 = vsyncpa [#allocation4], 0
    // Predicated region
    $region2: #{tpu_custom_call.1} parent=1 // pred_check
      _
    $region3: #{tpu_custom_call.1} parent=1 // pred_check_branch
      %12 = sbr.rel (0) target = $region5
    $region4: #{tpu_custom_call.1} parent=1 // pred_region
      %s14 = ssub.s32 128, 128
      %15 = vsyncadd [#allocation3], %s14
      %s17 = sshll.u32 [#allocation2], 4
      %s18 = int_to_ptr.vmem [resolvable:$true] %s17
      %20 = dma.hbm_to_vmem [thread:$0]  %s0, 128, %s18, [#allocation3]
    $region5: #{tpu_custom_call.1} parent=1 // pred_fallthru
      _
    // Predicated region
    $region6: #{tpu_custom_call.1} parent=1 // pred_check
      _
    $region7: #{tpu_custom_call.1} parent=1 // pred_check_branch
      %22 = sbr.rel (0) target = $region9
    $region8: #{tpu_custom_call.1} parent=1 // pred_region
      %s24 = ssub.s32 64, 64
      %25 = vsyncadd [#allocation6], %s24
      %s27 = sshll.u32 [#allocation5], 4
      %s28 = int_to_ptr.vmem [resolvable:$true] %s27
      %30 = dma.hbm_to_vmem [thread:$0]  %s1, 64, %s28, [#allocation6]
    $region9: #{tpu_custom_call.1} parent=1 // pred_fallthru
      _
    // Predicated region
    $region10: #{tpu_custom_call.1} parent=1 // pred_check
      _
    $region11: #{tpu_custom_call.1} parent=1 // pred_check_branch
      %32 = sbr.rel (0) target = $region13
    $region12: #{tpu_custom_call.1} parent=1 // pred_region
      %s34 = ssub.s32 5376, 5376
      %35 = vsyncadd [#allocation6], %s34
      %s36 = sshll.u32 [#allocation7], 4
      %s37 = int_to_ptr.vmem [resolvable:$true] %s36
      %42 = dma.hbm_to_vmem [thread:$0]  %s2, 5376, %s37, [#allocation6], 256, 256, 16
    $region13: #{tpu_custom_call.1} parent=1 // pred_fallthru
      _
    // Predicated region
    $region14: #{tpu_custom_call.1} parent=1 // pred_check
      _
    $region15: #{tpu_custom_call.1} parent=1 // pred_check_branch
      %44 = sbr.rel (0) target = $region17
    $region16: #{tpu_custom_call.1} parent=1 // pred_region
      %45 = dma.done [#allocation3], 128
    $region17: #{tpu_custom_call.1} parent=1 // pred_fallthru
      _
    // Predicated region
    $region18: #{tpu_custom_call.1} parent=1 // pred_check
      _
    $region19: #{tpu_custom_call.1} parent=1 // pred_check_branch
      %47 = sbr.rel (0) target = $region21
    $region20: #{tpu_custom_call.1} parent=1 // pred_region
      %48 = dma.done [#allocation6], 64
    $region21: #{tpu_custom_call.1} parent=1 // pred_fallthru
      _
    // Predicated region
    $region22: #{tpu_custom_call.1} parent=1 // pred_check
      _
    $region23: #{tpu_custom_call.1} parent=1 // pred_check_branch
      %50 = sbr.rel (0) target = $region25
    $region24: #{tpu_custom_call.1} parent=1 // pred_region
      %51 = dma.done [#allocation6], 5376
    $region25: #{tpu_custom_call.1} parent=1 // pred_fallthru
      _
    %v52 = vld [vmem:[#allocation2] sm:$0xff]
    %v53 = vld [vmem:[#allocation7] sm:$0xff]
    %v54 = vld [vmem:[#allocation7 + $0x8] sm:$0xff]
    %v55 = vld [vmem:[#allocation7 + $0x10] sm:$0xff]
    %v56 = vld [vmem:[#allocation7 + $0x18] sm:$0xff]
    %v57 = vld [vmem:[#allocation7 + $0x20] sm:$0x1]
    %v58 = vld [vmem:[#allocation7 + $0x28] sm:$0x1]
    %v59 = vld [vmem:[#allocation7 + $0x30] sm:$0xff]
    %v60 = vld [vmem:[#allocation7 + $0x38] sm:$0xff]
    %v61 = vld [vmem:[#allocation7 + $0x40] sm:$0xff]
    %v62 = vld [vmem:[#allocation7 + $0x48] sm:$0xff]
    %v63 = vld [vmem:[#allocation7 + $0x50] sm:$0xff]
    %v64 = vld [vmem:[#allocation7 + $0x58] sm:$0xff]
    %v65 = vld [vmem:[#allocation7 + $0x60] sm:$0xff]
    %v66 = vld [vmem:[#allocation7 + $0x68] sm:$0xff]
    %v67 = vld [vmem:[#allocation7 + $0x70] sm:$0xff]
    %v68 = vld [vmem:[#allocation7 + $0x78] sm:$0xff]
    %v69 = vld [vmem:[#allocation7 + $0x80] sm:$0xff]
    %v70 = vld [vmem:[#allocation7 + $0x88] sm:$0xff]
    %v71 = vld [vmem:[#allocation7 + $0x90] sm:$0xff]
    %v72 = vld [vmem:[#allocation7 + $0x98] sm:$0xff]
    %v73 = vld [vmem:[#allocation7 + $0xa0] sm:$0xff]
    %v74 = vld [vmem:[#allocation7 + $0xa8] sm:$0xff]
    %v75 = vld [vmem:[#allocation7 + $0xb0] sm:$0xff]
    %v76 = vld [vmem:[#allocation7 + $0xb8] sm:$0xff]
    %v77 = vld [vmem:[#allocation7 + $0xc0] sm:$0xff]
    %v78 = vld [vmem:[#allocation7 + $0xc8] sm:$0xff]
    %v79 = vld [vmem:[#allocation7 + $0xd0] sm:$0xff]
    %v80 = vld [vmem:[#allocation7 + $0xd8] sm:$0xff]
    %v81 = vld [vmem:[#allocation7 + $0xe0] sm:$0xff]
    %v82 = vld [vmem:[#allocation7 + $0xe8] sm:$0xff]
    %s83 = scalar_lea.vmem [#allocation7], 240
    %v84 = vld [vmem:[%s83] ss:$8 sm:$0x3]
    %v85 = vld [vmem:[#allocation5] sm:$0xf]
    %vm86 = vcmask 138240
    %v88 = vsel %vm86, %v52, 0
    %vm90 = vcmask 1040384
    %v92 = vsel %vm90, %v57, 0
    %v95 = vsel %vm90, %v58, 0
    %97 = vmatprep.subr.mxu0 %v54
    %98 = vmatpush1.msra.mxu0 %v53
    %99 = vmatprep.subr.mxu0 %v56
    %100 = vmatpush1.msra.mxu0 %v55
    %101 = vmatprep.subr.mxu0 %v95
    %102 = vmatpush1.msra.mxu0 %v92
    %103 = vmatprep.subr.mxu0 0.0
    %104 = vmatpush1.msra.mxu0 0.0
    %105 = vmatprep.subr.mxu0 0.0
    %106 = vmatpush1.msra.mxu0 0.0
    %107 = vmatprep.subr.mxu0 0.0
    %108 = vmatpush1.msra.mxu0 0.0
    %109 = vmatprep.subr.mxu0 0.0
    %110 = vmatpush1.msra.mxu0 0.0
    %111 = vmatprep.subr.mxu0 0.0
    %112 = vmatpush1.msra.mxu0 0.0
    %113 = vmatprep.subr.mxu0 0.0
    %114 = vmatpush1.msra.mxu0 0.0
    %115 = vmatprep.subr.mxu0 0.0
    %116 = vmatpush1.msra.mxu0 0.0
    %117 = vmatprep.subr.mxu0 0.0
    %118 = vmatpush1.msra.mxu0 0.0
    %119 = vmatprep.subr.mxu0 0.0
    %120 = vmatpush1.msra.mxu0 0.0
    %121 = vmatprep.subr.mxu0 0.0
    %122 = vmatpush1.msra.mxu0 0.0
    %123 = vmatprep.subr.mxu0 0.0
    %124 = vmatpush1.msra.mxu0 0.0
    %125 = vmatprep.subr.mxu0 0.0
    %126 = vmatpush1.msra.mxu0 0.0
    %127 = vmatprep.subr.mxu0 0.0
    %128 = vmatpush1.msra.mxu0 0.0
    %129 = vmatprep.subr.mxu0 0.0
    %130 = vmatpush1.msra.mxu0 0.0
    %131 = vmatprep.subr.mxu0 0.0
    %132 = vmatpush1.msra.mxu0 0.0
    %133 = vmatprep.subr.mxu0 0.0
    %134 = vmatpush1.msra.mxu0 0.0
    %135 = vmatprep.subr.mxu0 0.0
    %136 = vmatpush1.msra.mxu0 0.0
    %137 = vmatprep.subr.mxu0 0.0
    %138 = vmatpush1.msra.mxu0 0.0
    %139 = vmatprep.subr.mxu0 0.0
    %140 = vmatpush1.msra.mxu0 0.0
    %141 = vmatprep.subr.mxu0 0.0
    %142 = vmatpush1.msra.mxu0 0.0
    %143 = vmatprep.subr.mxu0 0.0
    %144 = vmatpush1.msra.mxu0 0.0
    %145 = vmatprep.subr.mxu0 0.0
    %146 = vmatpush1.msra.mxu0 0.0
    %147 = vmatprep.subr.mxu0 0.0
    %148 = vmatpush1.msra.mxu0 0.0
    %149 = vmatprep.subr.mxu0 0.0
    %150 = vmatpush1.msra.mxu0 0.0
    %151 = vmatprep.subr.mxu0 0.0
    %152 = vmatpush1.msra.mxu0 0.0
    %153 = vmatprep.subr.mxu0 0.0
    %154 = vmatpush1.msra.mxu0 0.0
    %155 = vmatprep.subr.mxu0 0.0
    %156 = vmatpush1.msra.mxu0 0.0
    %157 = vmatprep.subr.mxu0 0.0
    %158 = vmatpush1.msra.mxu0 0.0
    %159 = vmatprep.subr.mxu0 0.0
    %160 = vmatpush1.msra.mxu0 0.0
    %161 = vmatprep.mubr.f32.mxu0 0.0
    %162 = vmatmul.mubr.f32.gmra.mrb[0].mxu0 %v88
    %v163 = vpop.f32.mrb[0].mxu0
    %v164 = vadd.f32 0.0, %v163
    %v165 = vpop.f32.mrb[0].mxu0
    %v166 = vadd.f32 0.0, %v165
    %167 = vdwg.mxu0
    %v168 = vlaneseq
    %v169 = vand.u32 %v168, 127
    %v170 = vadd.s32 %v169, 128
    %vm171 = vcmp.lt.s32.totalorder %v169, 0
    %v172 = vsub.s32 0, %v169
    %v173 = vsel %vm171, %v172, %v169
    %v174 = vshrl.u32 %v173, 7
    %v175 = vand.u32 %v173, 127
    %v176 = vsub.s32 0, %v175
    %v177 = vsel %vm171, %v176, %v175
    %vm178 = vcmp.lt.s32.totalorder %v170, 0
    %v179 = vsub.s32 0, %v170
    %v180 = vsel %vm178, %v179, %v170
    %v181 = vshrl.u32 %v180, 7
    %v182 = vand.u32 %v180, 127
    %v183 = vsub.s32 0, %v182
    %v184 = vsel %vm178, %v183, %v182
    %vm185 = vcmp.ne.s32.totalorder %v177, 0
    %vm186 = vcmp.ne.s32.totalorder %v184, 0
    %vm187 = vcmp.lt.s32.totalorder %v177, 0
    %vm188 = vcmp.lt.s32.totalorder %v184, 0
    %vm189 = vmand %vm187, %vm185
    %vm190 = vmand %vm188, %vm186
    %v191 = vadd.s32 %v177, 128
    %v192 = vadd.s32 %v184, 128
    %v193 = vsel %vm189, %v191, %v177
    %v194 = vsel %vm190, %v192, %v184
    %vm195 = vcmp.ge.s32.totalorder %v193, 64
    %vm196 = vcmp.ge.s32.totalorder %v194, 64
    %vm197 = vcmp.lt.s32.totalorder %v193, 96
    %vm198 = vcmp.lt.s32.totalorder %v194, 96
    %vm199 = vmand %vm195, %vm197
    %vm200 = vmand %vm196, %vm198
    %v202 = vrot.slane %v85, 1
    %203 = vrot.lane.b32.xlu0 %v202, 32
    %v204 = vpop.permute.xlu0 %203
    %206 = vrot.lane.b32.xlu0 %v85, 64
    %v207 = vpop.permute.xlu0 %206
    %vm209 = vcmask 261120
    %v210 = vsel %vm209, %v85, %v204
    %vm211 = vcmask 523264
    %v212 = vsel %vm211, %v210, %v207
    %v214 = vlaneseq
    %v215 = vshrl.u32 %v214, 7
    %v216 = vsub.s32 0, %v215
    %v217 = vrot.slane %v84, %v216
    %v218 = vlaneseq
    %v219 = vshrl.u32 %v218, 7
    %v220 = vsub.s32 1, %v219
    %v221 = vrot.slane %v84, %v220
    %vm224 = vcmask 785408
    %v226 = vsel %vm224, %v212, 0
    %228 = vmatprep.subr.mxu0 %v60
    %229 = vmatpush1.msra.mxu0 %v59
    %230 = vmatprep.subr.mxu0 %v62
    %231 = vmatpush1.msra.mxu0 %v61
    %232 = vmatprep.subr.mxu0 %v64
    %233 = vmatpush1.msra.mxu0 %v63
    %234 = vmatprep.subr.mxu0 %v66
    %235 = vmatpush1.msra.mxu0 %v65
    %236 = vmatprep.subr.mxu0 %v68
    %237 = vmatpush1.msra.mxu0 %v67
    %238 = vmatprep.subr.mxu0 %v70
    %239 = vmatpush1.msra.mxu0 %v69
    %240 = vmatprep.subr.mxu0 %v72
    %241 = vmatpush1.msra.mxu0 %v71
    %242 = vmatprep.subr.mxu0 %v74
    %243 = vmatpush1.msra.mxu0 %v73
    %244 = vmatprep.subr.mxu0 %v76
    %245 = vmatpush1.msra.mxu0 %v75
    %246 = vmatprep.subr.mxu0 %v78
    %247 = vmatpush1.msra.mxu0 %v77
    %248 = vmatprep.subr.mxu0 %v80
    %249 = vmatpush1.msra.mxu0 %v79
    %250 = vmatprep.subr.mxu0 %v82
    %251 = vmatpush1.msra.mxu0 %v81
    %252 = vmatprep.subr.mxu0 0.0
    %253 = vmatpush1.msra.mxu0 0.0
    %254 = vmatprep.subr.mxu0 0.0
    %255 = vmatpush1.msra.mxu0 0.0
    %256 = vmatprep.subr.mxu0 0.0
    %257 = vmatpush1.msra.mxu0 0.0
    %258 = vmatprep.subr.mxu0 0.0
    %259 = vmatpush1.msra.mxu0 0.0
    %260 = vmatprep.subr.mxu0 0.0
    %261 = vmatpush1.msra.mxu0 0.0
    %262 = vmatprep.subr.mxu0 0.0
    %263 = vmatpush1.msra.mxu0 0.0
    %264 = vmatprep.subr.mxu0 0.0
    %265 = vmatpush1.msra.mxu0 0.0
    %266 = vmatprep.subr.mxu0 0.0
    %267 = vmatpush1.msra.mxu0 0.0
    %268 = vmatprep.subr.mxu0 0.0
    %269 = vmatpush1.msra.mxu0 0.0
    %270 = vmatprep.subr.mxu0 0.0
    %271 = vmatpush1.msra.mxu0 0.0
    %272 = vmatprep.subr.mxu0 0.0
    %273 = vmatpush1.msra.mxu0 0.0
    %274 = vmatprep.subr.mxu0 0.0
    %275 = vmatpush1.msra.mxu0 0.0
    %276 = vmatprep.subr.mxu0 0.0
    %277 = vmatpush1.msra.mxu0 0.0
    %278 = vmatprep.subr.mxu0 0.0
    %279 = vmatpush1.msra.mxu0 0.0
    %280 = vmatprep.subr.mxu0 0.0
    %281 = vmatpush1.msra.mxu0 0.0
    %282 = vmatprep.subr.mxu0 0.0
    %283 = vmatpush1.msra.mxu0 0.0
    %284 = vmatprep.subr.mxu0 0.0
    %285 = vmatpush1.msra.mxu0 0.0
    %286 = vmatprep.subr.mxu0 0.0
    %287 = vmatpush1.msra.mxu0 0.0
    %288 = vmatprep.subr.mxu0 0.0
    %289 = vmatpush1.msra.mxu0 0.0
    %290 = vmatprep.subr.mxu0 0.0
    %291 = vmatpush1.msra.mxu0 0.0
    %292 = vmatprep.mubr.f32.mxu0 0.0
    %293 = vmatmul.mubr.f32.gmra.mrb[0].mxu0 %v226
    %v294 = vpop.f32.mrb[0].mxu0
    %v295 = vadd.f32 %v217, %v294
    %v296 = vpop.f32.mrb[0].mxu0
    %297 = vdwg.mxu0
    %v298 = vadd.f32 %v295, %v164
    %v299 = vmul.f32 %v298, 0.5
    %v300 = vsel %vm199, %v298, %v299
    %v301 = vtanh.pop %v300
    %v302 = vmul.f32 %v301, 0.5
    %v303 = vadd.f32 %v302, 0.5
    %v304 = vsel %vm199, %v301, %v303
    %v305 = vrot.slane %v85, 2
    %306 = vrot.lane.b32.xlu0 %v305, 32
    %v307 = vpop.permute.xlu0 %306
    %v309 = vmul.f32 %v304, %v307
    %311 = vrot.lane.b32.xlu0 %v304, 64
    %v312 = vpop.permute.xlu0 %311
    %v314 = vmul.f32 %v304, %v312
    %316 = vrot.lane.b32.xlu0 %v314, 32
    %v317 = vpop.permute.xlu0 %316
    %v319 = vadd.f32 %v309, %v317
    %v320 = vtanh.pop %v319
    %322 = vrot.lane.b32.xlu0 %v320, 64
    %v323 = vpop.permute.xlu0 %322
    %v325 = vmul.f32 %v304, %v323
    %327 = vrot.lane.b32.xlu0 %v325, 32
    %v328 = vpop.permute.xlu0 %327
    %330 = vrot.lane.b32.xlu0 %v325, 96
    %v331 = vpop.permute.xlu0 %330
    %v333 = vsel %vm209, %v328, %v204
    %v334 = vsel %vm211, %v333, %v331
    %v336 = vsel %vm224, %v334, 0
    %338 = vmatprep.subr.mxu0 %v60
    %339 = vmatpush1.msra.mxu0 %v59
    %340 = vmatprep.subr.mxu0 %v62
    %341 = vmatpush1.msra.mxu0 %v61
    %342 = vmatprep.subr.mxu0 %v64
    %343 = vmatpush1.msra.mxu0 %v63
    %344 = vmatprep.subr.mxu0 %v66
    %345 = vmatpush1.msra.mxu0 %v65
    %346 = vmatprep.subr.mxu0 %v68
    %347 = vmatpush1.msra.mxu0 %v67
    %348 = vmatprep.subr.mxu0 %v70
    %349 = vmatpush1.msra.mxu0 %v69
    %350 = vmatprep.subr.mxu0 %v72
    %351 = vmatpush1.msra.mxu0 %v71
    %352 = vmatprep.subr.mxu0 %v74
    %353 = vmatpush1.msra.mxu0 %v73
    %354 = vmatprep.subr.mxu0 %v76
    %355 = vmatpush1.msra.mxu0 %v75
    %356 = vmatprep.subr.mxu0 %v78
    %357 = vmatpush1.msra.mxu0 %v77
    %358 = vmatprep.subr.mxu0 %v80
    %359 = vmatpush1.msra.mxu0 %v79
    %360 = vmatprep.subr.mxu0 %v82
    %361 = vmatpush1.msra.mxu0 %v81
    %362 = vmatprep.subr.mxu0 0.0
    %363 = vmatpush1.msra.mxu0 0.0
    %364 = vmatprep.subr.mxu0 0.0
    %365 = vmatpush1.msra.mxu0 0.0
    %366 = vmatprep.subr.mxu0 0.0
    %367 = vmatpush1.msra.mxu0 0.0
    %368 = vmatprep.subr.mxu0 0.0
    %369 = vmatpush1.msra.mxu0 0.0
    %370 = vmatprep.subr.mxu0 0.0
    %371 = vmatpush1.msra.mxu0 0.0
    %372 = vmatprep.subr.mxu0 0.0
    %373 = vmatpush1.msra.mxu0 0.0
    %374 = vmatprep.subr.mxu0 0.0
    %375 = vmatpush1.msra.mxu0 0.0
    %376 = vmatprep.subr.mxu0 0.0
    %377 = vmatpush1.msra.mxu0 0.0
    %378 = vmatprep.subr.mxu0 0.0
    %379 = vmatpush1.msra.mxu0 0.0
    %380 = vmatprep.subr.mxu0 0.0
    %381 = vmatpush1.msra.mxu0 0.0
    %382 = vmatprep.subr.mxu0 0.0
    %383 = vmatpush1.msra.mxu0 0.0
    %384 = vmatprep.subr.mxu0 0.0
    %385 = vmatpush1.msra.mxu0 0.0
    %386 = vmatprep.subr.mxu0 0.0
    %387 = vmatpush1.msra.mxu0 0.0
    %388 = vmatprep.subr.mxu0 0.0
    %389 = vmatpush1.msra.mxu0 0.0
    %390 = vmatprep.subr.mxu0 0.0
    %391 = vmatpush1.msra.mxu0 0.0
    %392 = vmatprep.subr.mxu0 0.0
    %393 = vmatpush1.msra.mxu0 0.0
    %394 = vmatprep.subr.mxu0 0.0
    %395 = vmatpush1.msra.mxu0 0.0
    %396 = vmatprep.subr.mxu0 0.0
    %397 = vmatpush1.msra.mxu0 0.0
    %398 = vmatprep.subr.mxu0 0.0
    %399 = vmatpush1.msra.mxu0 0.0
    %400 = vmatprep.subr.mxu0 0.0
    %401 = vmatpush1.msra.mxu0 0.0
    %402 = vmatprep.mubr.f32.mxu0 0.0
    %403 = vmatmul.mubr.f32.gmra.mrb[0].mxu0 %v336
    %v404 = vpop.f32.mrb[0].mxu0
    %v405 = vadd.f32 %v217, %v404
    %v406 = vpop.f32.mrb[0].mxu0
    %v407 = vadd.f32 %v221, %v406
    %408 = vdwg.mxu0
    %v411 = vrot.slane %v164, 1
    %v412 = vrot.slane %v166, 1
    %v415 = vadd.f32 %v405, %v411
    %v416 = vadd.f32 %v407, %v412
    %v417 = vmul.f32 %v415, 0.5
    %v418 = vmul.f32 %v416, 0.5
    %v419 = vsel %vm199, %v415, %v417
    %v420 = vsel %vm200, %v416, %v418
    %v421 = vtanh.pop %v419
    %v422 = vtanh.pop %v420
    %v423 = vmul.f32 %v421, 0.5
    %v424 = vmul.f32 %v422, 0.5
    %v425 = vadd.f32 %v423, 0.5
    %v426 = vadd.f32 %v424, 0.5
    %v427 = vsel %vm199, %v421, %v425
    %v428 = vsel %vm200, %v422, %v426
    %v429 = vmul.f32 %v427, %v319
    %431 = vrot.lane.b32.xlu0 %v427, 64
    %v432 = vpop.permute.xlu0 %431
    %v434 = vmul.f32 %v427, %v432
    %436 = vrot.lane.b32.xlu0 %v434, 32
    %v437 = vpop.permute.xlu0 %436
    %v439 = vadd.f32 %v429, %v437
    %v440 = vtanh.pop %v439
    %442 = vrot.lane.b32.xlu0 %v440, 64
    %v443 = vpop.permute.xlu0 %442
    %v445 = vmul.f32 %v427, %v443
    %v446 = vrot.slane %v85, 3
    %447 = vrot.lane.b32.xlu0 %v446, 32
    %v448 = vpop.permute.xlu0 %447
    %v450 = vmul.f32 %v428, %v448
    %452 = vrot.lane.b32.xlu0 %v428, 64
    %v453 = vpop.permute.xlu0 %452
    %v455 = vmul.f32 %v428, %v453
    %457 = vrot.lane.b32.xlu0 %v455, 32
    %v458 = vpop.permute.xlu0 %457
    %v460 = vadd.f32 %v450, %v458
    %v461 = vtanh.pop %v460
    %463 = vrot.lane.b32.xlu0 %v461, 64
    %v464 = vpop.permute.xlu0 %463
    %v466 = vmul.f32 %v428, %v464
    %468 = vrot.lane.b32.xlu0 %v445, 32
    %v469 = vpop.permute.xlu0 %468
    %472 = vrot.lane.b32.xlu0 %v466, 64
    %v473 = vpop.permute.xlu0 %472
    %475 = vrot.lane.b32.xlu0 %v445, 96
    %v476 = vpop.permute.xlu0 %475
    %v478 = vsel %vm209, %v469, %v473
    %v479 = vsel %vm211, %v478, %v476
    %v481 = vsel %vm224, %v479, 0
    %483 = vmatprep.subr.mxu0 %v60
    %484 = vmatpush1.msra.mxu0 %v59
    %485 = vmatprep.subr.mxu0 %v62
    %486 = vmatpush1.msra.mxu0 %v61
    %487 = vmatprep.subr.mxu0 %v64
    %488 = vmatpush1.msra.mxu0 %v63
    %489 = vmatprep.subr.mxu0 %v66
    %490 = vmatpush1.msra.mxu0 %v65
    %491 = vmatprep.subr.mxu0 %v68
    %492 = vmatpush1.msra.mxu0 %v67
    %493 = vmatprep.subr.mxu0 %v70
    %494 = vmatpush1.msra.mxu0 %v69
    %495 = vmatprep.subr.mxu0 %v72
    %496 = vmatpush1.msra.mxu0 %v71
    %497 = vmatprep.subr.mxu0 %v74
    %498 = vmatpush1.msra.mxu0 %v73
    %499 = vmatprep.subr.mxu0 %v76
    %500 = vmatpush1.msra.mxu0 %v75
    %501 = vmatprep.subr.mxu0 %v78
    %502 = vmatpush1.msra.mxu0 %v77
    %503 = vmatprep.subr.mxu0 %v80
    %504 = vmatpush1.msra.mxu0 %v79
    %505 = vmatprep.subr.mxu0 %v82
    %506 = vmatpush1.msra.mxu0 %v81
    %507 = vmatprep.subr.mxu0 0.0
    %508 = vmatpush1.msra.mxu0 0.0
    %509 = vmatprep.subr.mxu0 0.0
    %510 = vmatpush1.msra.mxu0 0.0
    %511 = vmatprep.subr.mxu0 0.0
    %512 = vmatpush1.msra.mxu0 0.0
    %513 = vmatprep.subr.mxu0 0.0
    %514 = vmatpush1.msra.mxu0 0.0
    %515 = vmatprep.subr.mxu0 0.0
    %516 = vmatpush1.msra.mxu0 0.0
    %517 = vmatprep.subr.mxu0 0.0
    %518 = vmatpush1.msra.mxu0 0.0
    %519 = vmatprep.subr.mxu0 0.0
    %520 = vmatpush1.msra.mxu0 0.0
    %521 = vmatprep.subr.mxu0 0.0
    %522 = vmatpush1.msra.mxu0 0.0
    %523 = vmatprep.subr.mxu0 0.0
    %524 = vmatpush1.msra.mxu0 0.0
    %525 = vmatprep.subr.mxu0 0.0
    %526 = vmatpush1.msra.mxu0 0.0
    %527 = vmatprep.subr.mxu0 0.0
    %528 = vmatpush1.msra.mxu0 0.0
    %529 = vmatprep.subr.mxu0 0.0
    %530 = vmatpush1.msra.mxu0 0.0
    %531 = vmatprep.subr.mxu0 0.0
    %532 = vmatpush1.msra.mxu0 0.0
    %533 = vmatprep.subr.mxu0 0.0
    %534 = vmatpush1.msra.mxu0 0.0
    %535 = vmatprep.subr.mxu0 0.0
    %536 = vmatpush1.msra.mxu0 0.0
    %537 = vmatprep.subr.mxu0 0.0
    %538 = vmatpush1.msra.mxu0 0.0
    %539 = vmatprep.subr.mxu0 0.0
    %540 = vmatpush1.msra.mxu0 0.0
    %541 = vmatprep.subr.mxu0 0.0
    %542 = vmatpush1.msra.mxu0 0.0
    %543 = vmatprep.subr.mxu0 0.0
    %544 = vmatpush1.msra.mxu0 0.0
    %545 = vmatprep.subr.mxu0 0.0
    %546 = vmatpush1.msra.mxu0 0.0
    %547 = vmatprep.mubr.f32.mxu0 0.0
    %548 = vmatmul.mubr.f32.gmra.mrb[0].mxu0 %v481
    %v549 = vpop.f32.mrb[0].mxu0
    %v550 = vadd.f32 %v217, %v549
    %v551 = vpop.f32.mrb[0].mxu0
    %v552 = vadd.f32 %v221, %v551
    %553 = vdwg.mxu0
    %v554 = vrot.slane %v164, 2
    %v555 = vrot.slane %v166, 2
    %v558 = vadd.f32 %v550, %v554
    %v559 = vadd.f32 %v552, %v555
    %v560 = vmul.f32 %v558, 0.5
    %v561 = vmul.f32 %v559, 0.5
    %v562 = vsel %vm199, %v558, %v560
    %v563 = vsel %vm200, %v559, %v561
    %v564 = vtanh.pop %v562
    %v565 = vtanh.pop %v563
    %v566 = vmul.f32 %v564, 0.5
    %v567 = vmul.f32 %v565, 0.5
    %v568 = vadd.f32 %v566, 0.5
    %v569 = vadd.f32 %v567, 0.5
    %v570 = vsel %vm199, %v564, %v568
    %v571 = vsel %vm200, %v565, %v569
    %v572 = vmul.f32 %v570, %v439
    %574 = vrot.lane.b32.xlu0 %v570, 64
    %v575 = vpop.permute.xlu0 %574
    %v577 = vmul.f32 %v570, %v575
    %579 = vrot.lane.b32.xlu0 %v577, 32
    %v580 = vpop.permute.xlu0 %579
    %v582 = vadd.f32 %v572, %v580
    %v583 = vtanh.pop %v582
    %585 = vrot.lane.b32.xlu0 %v583, 64
    %v586 = vpop.permute.xlu0 %585
    %v588 = vmul.f32 %v570, %v586
    %v589 = vmul.f32 %v571, %v460
    %591 = vrot.lane.b32.xlu0 %v571, 64
    %v592 = vpop.permute.xlu0 %591
    %v594 = vmul.f32 %v571, %v592
    %596 = vrot.lane.b32.xlu0 %v594, 32
    %v597 = vpop.permute.xlu0 %596
    %v599 = vadd.f32 %v589, %v597
    %v600 = vtanh.pop %v599
    %602 = vrot.lane.b32.xlu0 %v600, 64
    %v603 = vpop.permute.xlu0 %602
    %v605 = vmul.f32 %v571, %v603
    %607 = vrot.lane.b32.xlu0 %v588, 32
    %v608 = vpop.permute.xlu0 %607
    %611 = vrot.lane.b32.xlu0 %v605, 64
    %v612 = vpop.permute.xlu0 %611
    %614 = vrot.lane.b32.xlu0 %v588, 96
    %v615 = vpop.permute.xlu0 %614
    %v617 = vsel %vm209, %v608, %v612
    %v618 = vsel %vm211, %v617, %v615
    %v620 = vsel %vm224, %v618, 0
    %622 = vmatprep.subr.mxu0 %v60
    %623 = vmatpush1.msra.mxu0 %v59
    %624 = vmatprep.subr.mxu0 %v62
    %625 = vmatpush1.msra.mxu0 %v61
    %626 = vmatprep.subr.mxu0 %v64
    %627 = vmatpush1.msra.mxu0 %v63
    %628 = vmatprep.subr.mxu0 %v66
    %629 = vmatpush1.msra.mxu0 %v65
    %630 = vmatprep.subr.mxu0 %v68
    %631 = vmatpush1.msra.mxu0 %v67
    %632 = vmatprep.subr.mxu0 %v70
    %633 = vmatpush1.msra.mxu0 %v69
    %634 = vmatprep.subr.mxu0 %v72
    %635 = vmatpush1.msra.mxu0 %v71
    %636 = vmatprep.subr.mxu0 %v74
    %637 = vmatpush1.msra.mxu0 %v73
    %638 = vmatprep.subr.mxu0 %v76
    %639 = vmatpush1.msra.mxu0 %v75
    %640 = vmatprep.subr.mxu0 %v78
    %641 = vmatpush1.msra.mxu0 %v77
    %642 = vmatprep.subr.mxu0 %v80
    %643 = vmatpush1.msra.mxu0 %v79
    %644 = vmatprep.subr.mxu0 %v82
    %645 = vmatpush1.msra.mxu0 %v81
    %646 = vmatprep.subr.mxu0 0.0
    %647 = vmatpush1.msra.mxu0 0.0
    %648 = vmatprep.subr.mxu0 0.0
    %649 = vmatpush1.msra.mxu0 0.0
    %650 = vmatprep.subr.mxu0 0.0
    %651 = vmatpush1.msra.mxu0 0.0
    %652 = vmatprep.subr.mxu0 0.0
    %653 = vmatpush1.msra.mxu0 0.0
    %654 = vmatprep.subr.mxu0 0.0
    %655 = vmatpush1.msra.mxu0 0.0
    %656 = vmatprep.subr.mxu0 0.0
    %657 = vmatpush1.msra.mxu0 0.0
    %658 = vmatprep.subr.mxu0 0.0
    %659 = vmatpush1.msra.mxu0 0.0
    %660 = vmatprep.subr.mxu0 0.0
    %661 = vmatpush1.msra.mxu0 0.0
    %662 = vmatprep.subr.mxu0 0.0
    %663 = vmatpush1.msra.mxu0 0.0
    %664 = vmatprep.subr.mxu0 0.0
    %665 = vmatpush1.msra.mxu0 0.0
    %666 = vmatprep.subr.mxu0 0.0
    %667 = vmatpush1.msra.mxu0 0.0
    %668 = vmatprep.subr.mxu0 0.0
    %669 = vmatpush1.msra.mxu0 0.0
    %670 = vmatprep.subr.mxu0 0.0
    %671 = vmatpush1.msra.mxu0 0.0
    %672 = vmatprep.subr.mxu0 0.0
    %673 = vmatpush1.msra.mxu0 0.0
    %674 = vmatprep.subr.mxu0 0.0
    %675 = vmatpush1.msra.mxu0 0.0
    %676 = vmatprep.subr.mxu0 0.0
    %677 = vmatpush1.msra.mxu0 0.0
    %678 = vmatprep.subr.mxu0 0.0
    %679 = vmatpush1.msra.mxu0 0.0
    %680 = vmatprep.subr.mxu0 0.0
    %681 = vmatpush1.msra.mxu0 0.0
    %682 = vmatprep.subr.mxu0 0.0
    %683 = vmatpush1.msra.mxu0 0.0
    %684 = vmatprep.subr.mxu0 0.0
    %685 = vmatpush1.msra.mxu0 0.0
    %686 = vmatprep.mubr.f32.mxu0 0.0
    %687 = vmatmul.mubr.f32.gmra.mrb[0].mxu0 %v620
    %v688 = vpop.f32.mrb[0].mxu0
    %v689 = vadd.f32 %v217, %v688
    %v690 = vpop.f32.mrb[0].mxu0
    %v691 = vadd.f32 %v221, %v690
    %692 = vdwg.mxu0
    %v693 = vrot.slane %v164, 3
    %v694 = vrot.slane %v166, 3
    %v697 = vadd.f32 %v689, %v693
    %v698 = vadd.f32 %v691, %v694
    %v699 = vmul.f32 %v697, 0.5
    %v700 = vmul.f32 %v698, 0.5
    %v701 = vsel %vm199, %v697, %v699
    %v702 = vsel %vm200, %v698, %v700
    %v703 = vtanh.pop %v701
    %v704 = vtanh.pop %v702
    %v705 = vmul.f32 %v703, 0.5
    %v706 = vmul.f32 %v704, 0.5
    %v707 = vadd.f32 %v705, 0.5
    %v708 = vadd.f32 %v706, 0.5
    %v709 = vsel %vm199, %v703, %v707
    %v710 = vsel %vm200, %v704, %v708
    %v711 = vmul.f32 %v709, %v582
    %713 = vrot.lane.b32.xlu0 %v709, 64
    %v714 = vpop.permute.xlu0 %713
    %v716 = vmul.f32 %v709, %v714
    %718 = vrot.lane.b32.xlu0 %v716, 32
    %v719 = vpop.permute.xlu0 %718
    %v721 = vadd.f32 %v711, %v719
    %v722 = vtanh.pop %v721
    %724 = vrot.lane.b32.xlu0 %v722, 64
    %v725 = vpop.permute.xlu0 %724
    %v727 = vmul.f32 %v709, %v725
    %v728 = vmul.f32 %v710, %v599
    %730 = vrot.lane.b32.xlu0 %v710, 64
    %v731 = vpop.permute.xlu0 %730
    %v733 = vmul.f32 %v710, %v731
    %735 = vrot.lane.b32.xlu0 %v733, 32
    %v736 = vpop.permute.xlu0 %735
    %v738 = vadd.f32 %v728, %v736
    %v739 = vtanh.pop %v738
    %741 = vrot.lane.b32.xlu0 %v739, 64
    %v742 = vpop.permute.xlu0 %741
    %v744 = vmul.f32 %v710, %v742
    %746 = vrot.lane.b32.xlu0 %v727, 32
    %v747 = vpop.permute.xlu0 %746
    %750 = vrot.lane.b32.xlu0 %v744, 64
    %v751 = vpop.permute.xlu0 %750
    %753 = vrot.lane.b32.xlu0 %v727, 96
    %v754 = vpop.permute.xlu0 %753
    %v756 = vsel %vm209, %v747, %v751
    %v757 = vsel %vm211, %v756, %v754
    %v759 = vsel %vm224, %v757, 0
    %761 = vmatprep.subr.mxu0 %v60
    %762 = vmatpush1.msra.mxu0 %v59
    %763 = vmatprep.subr.mxu0 %v62
    %764 = vmatpush1.msra.mxu0 %v61
    %765 = vmatprep.subr.mxu0 %v64
    %766 = vmatpush1.msra.mxu0 %v63
    %767 = vmatprep.subr.mxu0 %v66
    %768 = vmatpush1.msra.mxu0 %v65
    %769 = vmatprep.subr.mxu0 %v68
    %770 = vmatpush1.msra.mxu0 %v67
    %771 = vmatprep.subr.mxu0 %v70
    %772 = vmatpush1.msra.mxu0 %v69
    %773 = vmatprep.subr.mxu0 %v72
    %774 = vmatpush1.msra.mxu0 %v71
    %775 = vmatprep.subr.mxu0 %v74
    %776 = vmatpush1.msra.mxu0 %v73
    %777 = vmatprep.subr.mxu0 %v76
    %778 = vmatpush1.msra.mxu0 %v75
    %779 = vmatprep.subr.mxu0 %v78
    %780 = vmatpush1.msra.mxu0 %v77
    %781 = vmatprep.subr.mxu0 %v80
    %782 = vmatpush1.msra.mxu0 %v79
    %783 = vmatprep.subr.mxu0 %v82
    %784 = vmatpush1.msra.mxu0 %v81
    %785 = vmatprep.subr.mxu0 0.0
    %786 = vmatpush1.msra.mxu0 0.0
    %787 = vmatprep.subr.mxu0 0.0
    %788 = vmatpush1.msra.mxu0 0.0
    %789 = vmatprep.subr.mxu0 0.0
    %790 = vmatpush1.msra.mxu0 0.0
    %791 = vmatprep.subr.mxu0 0.0
    %792 = vmatpush1.msra.mxu0 0.0
    %793 = vmatprep.subr.mxu0 0.0
    %794 = vmatpush1.msra.mxu0 0.0
    %795 = vmatprep.subr.mxu0 0.0
    %796 = vmatpush1.msra.mxu0 0.0
    %797 = vmatprep.subr.mxu0 0.0
    %798 = vmatpush1.msra.mxu0 0.0
    %799 = vmatprep.subr.mxu0 0.0
    %800 = vmatpush1.msra.mxu0 0.0
    %801 = vmatprep.subr.mxu0 0.0
    %802 = vmatpush1.msra.mxu0 0.0
    %803 = vmatprep.subr.mxu0 0.0
    %804 = vmatpush1.msra.mxu0 0.0
    %805 = vmatprep.subr.mxu0 0.0
    %806 = vmatpush1.msra.mxu0 0.0
    %807 = vmatprep.subr.mxu0 0.0
    %808 = vmatpush1.msra.mxu0 0.0
    %809 = vmatprep.subr.mxu0 0.0
    %810 = vmatpush1.msra.mxu0 0.0
    %811 = vmatprep.subr.mxu0 0.0
    %812 = vmatpush1.msra.mxu0 0.0
    %813 = vmatprep.subr.mxu0 0.0
    %814 = vmatpush1.msra.mxu0 0.0
    %815 = vmatprep.subr.mxu0 0.0
    %816 = vmatpush1.msra.mxu0 0.0
    %817 = vmatprep.subr.mxu0 0.0
    %818 = vmatpush1.msra.mxu0 0.0
    %819 = vmatprep.subr.mxu0 0.0
    %820 = vmatpush1.msra.mxu0 0.0
    %821 = vmatprep.subr.mxu0 0.0
    %822 = vmatpush1.msra.mxu0 0.0
    %823 = vmatprep.subr.mxu0 0.0
    %824 = vmatpush1.msra.mxu0 0.0
    %825 = vmatprep.mubr.f32.mxu0 0.0
    %826 = vmatmul.mubr.f32.gmra.mrb[0].mxu0 %v759
    %v827 = vpop.f32.mrb[0].mxu0
    %v828 = vadd.f32 %v217, %v827
    %v829 = vpop.f32.mrb[0].mxu0
    %v830 = vadd.f32 %v221, %v829
    %831 = vdwg.mxu0
    %v832 = vrot.slane %v164, 4
    %v833 = vrot.slane %v166, 4
    %v836 = vadd.f32 %v828, %v832
    %v837 = vadd.f32 %v830, %v833
    %v838 = vmul.f32 %v836, 0.5
    %v839 = vmul.f32 %v837, 0.5
    %v840 = vsel %vm199, %v836, %v838
    %v841 = vsel %vm200, %v837, %v839
    %v842 = vtanh.pop %v840
    %v843 = vtanh.pop %v841
    %v844 = vmul.f32 %v842, 0.5
    %v845 = vmul.f32 %v843, 0.5
    %v846 = vadd.f32 %v844, 0.5
    %v847 = vadd.f32 %v845, 0.5
    %v848 = vsel %vm199, %v842, %v846
    %v849 = vsel %vm200, %v843, %v847
    %v850 = vmul.f32 %v848, %v721
    %852 = vrot.lane.b32.xlu0 %v848, 64
    %v853 = vpop.permute.xlu0 %852
    %v855 = vmul.f32 %v848, %v853
    %857 = vrot.lane.b32.xlu0 %v855, 32
    %v858 = vpop.permute.xlu0 %857
    %v860 = vadd.f32 %v850, %v858
    %v861 = vtanh.pop %v860
    %863 = vrot.lane.b32.xlu0 %v861, 64
    %v864 = vpop.permute.xlu0 %863
    %v866 = vmul.f32 %v848, %v864
    %v867 = vmul.f32 %v849, %v738
    %869 = vrot.lane.b32.xlu0 %v849, 64
    %v870 = vpop.permute.xlu0 %869
    %v872 = vmul.f32 %v849, %v870
    %874 = vrot.lane.b32.xlu0 %v872, 32
    %v875 = vpop.permute.xlu0 %874
    %v877 = vadd.f32 %v867, %v875
    %v878 = vtanh.pop %v877
    %880 = vrot.lane.b32.xlu0 %v878, 64
    %v881 = vpop.permute.xlu0 %880
    %v883 = vmul.f32 %v849, %v881
    %885 = vrot.lane.b32.xlu0 %v866, 32
    %v886 = vpop.permute.xlu0 %885
    %889 = vrot.lane.b32.xlu0 %v883, 64
    %v890 = vpop.permute.xlu0 %889
    %892 = vrot.lane.b32.xlu0 %v866, 96
    %v893 = vpop.permute.xlu0 %892
    %v895 = vsel %vm209, %v886, %v890
    %v896 = vsel %vm211, %v895, %v893
    %v898 = vsel %vm224, %v896, 0
    %900 = vmatprep.subr.mxu0 %v60
    %901 = vmatpush1.msra.mxu0 %v59
    %902 = vmatprep.subr.mxu0 %v62
    %903 = vmatpush1.msra.mxu0 %v61
    %904 = vmatprep.subr.mxu0 %v64
    %905 = vmatpush1.msra.mxu0 %v63
    %906 = vmatprep.subr.mxu0 %v66
    %907 = vmatpush1.msra.mxu0 %v65
    %908 = vmatprep.subr.mxu0 %v68
    %909 = vmatpush1.msra.mxu0 %v67
    %910 = vmatprep.subr.mxu0 %v70
    %911 = vmatpush1.msra.mxu0 %v69
    %912 = vmatprep.subr.mxu0 %v72
    %913 = vmatpush1.msra.mxu0 %v71
    %914 = vmatprep.subr.mxu0 %v74
    %915 = vmatpush1.msra.mxu0 %v73
    %916 = vmatprep.subr.mxu0 %v76
    %917 = vmatpush1.msra.mxu0 %v75
    %918 = vmatprep.subr.mxu0 %v78
    %919 = vmatpush1.msra.mxu0 %v77
    %920 = vmatprep.subr.mxu0 %v80
    %921 = vmatpush1.msra.mxu0 %v79
    %922 = vmatprep.subr.mxu0 %v82
    %923 = vmatpush1.msra.mxu0 %v81
    %924 = vmatprep.subr.mxu0 0.0
    %925 = vmatpush1.msra.mxu0 0.0
    %926 = vmatprep.subr.mxu0 0.0
    %927 = vmatpush1.msra.mxu0 0.0
    %928 = vmatprep.subr.mxu0 0.0
    %929 = vmatpush1.msra.mxu0 0.0
    %930 = vmatprep.subr.mxu0 0.0
    %931 = vmatpush1.msra.mxu0 0.0
    %932 = vmatprep.subr.mxu0 0.0
    %933 = vmatpush1.msra.mxu0 0.0
    %934 = vmatprep.subr.mxu0 0.0
    %935 = vmatpush1.msra.mxu0 0.0
    %936 = vmatprep.subr.mxu0 0.0
    %937 = vmatpush1.msra.mxu0 0.0
    %938 = vmatprep.subr.mxu0 0.0
    %939 = vmatpush1.msra.mxu0 0.0
    %940 = vmatprep.subr.mxu0 0.0
    %941 = vmatpush1.msra.mxu0 0.0
    %942 = vmatprep.subr.mxu0 0.0
    %943 = vmatpush1.msra.mxu0 0.0
    %944 = vmatprep.subr.mxu0 0.0
    %945 = vmatpush1.msra.mxu0 0.0
    %946 = vmatprep.subr.mxu0 0.0
    %947 = vmatpush1.msra.mxu0 0.0
    %948 = vmatprep.subr.mxu0 0.0
    %949 = vmatpush1.msra.mxu0 0.0
    %950 = vmatprep.subr.mxu0 0.0
    %951 = vmatpush1.msra.mxu0 0.0
    %952 = vmatprep.subr.mxu0 0.0
    %953 = vmatpush1.msra.mxu0 0.0
    %954 = vmatprep.subr.mxu0 0.0
    %955 = vmatpush1.msra.mxu0 0.0
    %956 = vmatprep.subr.mxu0 0.0
    %957 = vmatpush1.msra.mxu0 0.0
    %958 = vmatprep.subr.mxu0 0.0
    %959 = vmatpush1.msra.mxu0 0.0
    %960 = vmatprep.subr.mxu0 0.0
    %961 = vmatpush1.msra.mxu0 0.0
    %962 = vmatprep.subr.mxu0 0.0
    %963 = vmatpush1.msra.mxu0 0.0
    %964 = vmatprep.mubr.f32.mxu0 0.0
    %965 = vmatmul.mubr.f32.gmra.mrb[0].mxu0 %v898
    %v966 = vpop.f32.mrb[0].mxu0
    %v967 = vadd.f32 %v217, %v966
    %v968 = vpop.f32.mrb[0].mxu0
    %v969 = vadd.f32 %v221, %v968
    %970 = vdwg.mxu0
    %v971 = vrot.slane %v164, 5
    %v972 = vrot.slane %v166, 5
    %v975 = vadd.f32 %v967, %v971
    %v976 = vadd.f32 %v969, %v972
    %v977 = vmul.f32 %v975, 0.5
    %v978 = vmul.f32 %v976, 0.5
    %v979 = vsel %vm199, %v975, %v977
    %v980 = vsel %vm200, %v976, %v978
    %v981 = vtanh.pop %v979
    %v982 = vtanh.pop %v980
    %v983 = vmul.f32 %v981, 0.5
    %v984 = vmul.f32 %v982, 0.5
    %v985 = vadd.f32 %v983, 0.5
    %v986 = vadd.f32 %v984, 0.5
    %v987 = vsel %vm199, %v981, %v985
    %v988 = vsel %vm200, %v982, %v986
    %v989 = vmul.f32 %v987, %v860
    %991 = vrot.lane.b32.xlu0 %v987, 64
    %v992 = vpop.permute.xlu0 %991
    %v994 = vmul.f32 %v987, %v992
    %996 = vrot.lane.b32.xlu0 %v994, 32
    %v997 = vpop.permute.xlu0 %996
    %v999 = vadd.f32 %v989, %v997
    %v1000 = vtanh.pop %v999
    %1002 = vrot.lane.b32.xlu0 %v1000, 64
    %v1003 = vpop.permute.xlu0 %1002
    %v1005 = vmul.f32 %v987, %v1003
    %v1006 = vmul.f32 %v988, %v877
    %1008 = vrot.lane.b32.xlu0 %v988, 64
    %v1009 = vpop.permute.xlu0 %1008
    %v1011 = vmul.f32 %v988, %v1009
    %1013 = vrot.lane.b32.xlu0 %v1011, 32
    %v1014 = vpop.permute.xlu0 %1013
    %v1016 = vadd.f32 %v1006, %v1014
    %v1017 = vtanh.pop %v1016
    %1019 = vrot.lane.b32.xlu0 %v1017, 64
    %v1020 = vpop.permute.xlu0 %1019
    %v1022 = vmul.f32 %v988, %v1020
    %1024 = vrot.lane.b32.xlu0 %v1005, 32
    %v1025 = vpop.permute.xlu0 %1024
    %1028 = vrot.lane.b32.xlu0 %v1022, 64
    %v1029 = vpop.permute.xlu0 %1028
    %1031 = vrot.lane.b32.xlu0 %v1005, 96
    %v1032 = vpop.permute.xlu0 %1031
    %v1034 = vsel %vm209, %v1025, %v1029
    %v1035 = vsel %vm211, %v1034, %v1032
    %v1037 = vsel %vm224, %v1035, 0
    %1039 = vmatprep.subr.mxu0 %v60
    %1040 = vmatpush1.msra.mxu0 %v59
    %1041 = vmatprep.subr.mxu0 %v62
    %1042 = vmatpush1.msra.mxu0 %v61
    %1043 = vmatprep.subr.mxu0 %v64
    %1044 = vmatpush1.msra.mxu0 %v63
    %1045 = vmatprep.subr.mxu0 %v66
    %1046 = vmatpush1.msra.mxu0 %v65
    %1047 = vmatprep.subr.mxu0 %v68
    %1048 = vmatpush1.msra.mxu0 %v67
    %1049 = vmatprep.subr.mxu0 %v70
    %1050 = vmatpush1.msra.mxu0 %v69
    %1051 = vmatprep.subr.mxu0 %v72
    %1052 = vmatpush1.msra.mxu0 %v71
    %1053 = vmatprep.subr.mxu0 %v74
    %1054 = vmatpush1.msra.mxu0 %v73
    %1055 = vmatprep.subr.mxu0 %v76
    %1056 = vmatpush1.msra.mxu0 %v75
    %1057 = vmatprep.subr.mxu0 %v78
    %1058 = vmatpush1.msra.mxu0 %v77
    %1059 = vmatprep.subr.mxu0 %v80
    %1060 = vmatpush1.msra.mxu0 %v79
    %1061 = vmatprep.subr.mxu0 %v82
    %1062 = vmatpush1.msra.mxu0 %v81
    %1063 = vmatprep.subr.mxu0 0.0
    %1064 = vmatpush1.msra.mxu0 0.0
    %1065 = vmatprep.subr.mxu0 0.0
    %1066 = vmatpush1.msra.mxu0 0.0
    %1067 = vmatprep.subr.mxu0 0.0
    %1068 = vmatpush1.msra.mxu0 0.0
    %1069 = vmatprep.subr.mxu0 0.0
    %1070 = vmatpush1.msra.mxu0 0.0
    %1071 = vmatprep.subr.mxu0 0.0
    %1072 = vmatpush1.msra.mxu0 0.0
    %1073 = vmatprep.subr.mxu0 0.0
    %1074 = vmatpush1.msra.mxu0 0.0
    %1075 = vmatprep.subr.mxu0 0.0
    %1076 = vmatpush1.msra.mxu0 0.0
    %1077 = vmatprep.subr.mxu0 0.0
    %1078 = vmatpush1.msra.mxu0 0.0
    %1079 = vmatprep.subr.mxu0 0.0
    %1080 = vmatpush1.msra.mxu0 0.0
    %1081 = vmatprep.subr.mxu0 0.0
    %1082 = vmatpush1.msra.mxu0 0.0
    %1083 = vmatprep.subr.mxu0 0.0
    %1084 = vmatpush1.msra.mxu0 0.0
    %1085 = vmatprep.subr.mxu0 0.0
    %1086 = vmatpush1.msra.mxu0 0.0
    %1087 = vmatprep.subr.mxu0 0.0
    %1088 = vmatpush1.msra.mxu0 0.0
    %1089 = vmatprep.subr.mxu0 0.0
    %1090 = vmatpush1.msra.mxu0 0.0
    %1091 = vmatprep.subr.mxu0 0.0
    %1092 = vmatpush1.msra.mxu0 0.0
    %1093 = vmatprep.subr.mxu0 0.0
    %1094 = vmatpush1.msra.mxu0 0.0
    %1095 = vmatprep.subr.mxu0 0.0
    %1096 = vmatpush1.msra.mxu0 0.0
    %1097 = vmatprep.subr.mxu0 0.0
    %1098 = vmatpush1.msra.mxu0 0.0
    %1099 = vmatprep.subr.mxu0 0.0
    %1100 = vmatpush1.msra.mxu0 0.0
    %1101 = vmatprep.subr.mxu0 0.0
    %1102 = vmatpush1.msra.mxu0 0.0
    %1103 = vmatprep.mubr.f32.mxu0 0.0
    %1104 = vmatmul.mubr.f32.gmra.mrb[0].mxu0 %v1037
    %v1105 = vpop.f32.mrb[0].mxu0
    %v1106 = vadd.f32 %v217, %v1105
    %v1107 = vpop.f32.mrb[0].mxu0
    %v1108 = vadd.f32 %v221, %v1107
    %1109 = vdwg.mxu0
    %v1110 = vrot.slane %v164, 6
    %v1111 = vrot.slane %v166, 6
    %v1114 = vadd.f32 %v1106, %v1110
    %v1115 = vadd.f32 %v1108, %v1111
    %v1116 = vmul.f32 %v1114, 0.5
    %v1117 = vmul.f32 %v1115, 0.5
    %v1118 = vsel %vm199, %v1114, %v1116
    %v1119 = vsel %vm200, %v1115, %v1117
    %v1120 = vtanh.pop %v1118
    %v1121 = vtanh.pop %v1119
    %v1122 = vmul.f32 %v1120, 0.5
    %v1123 = vmul.f32 %v1121, 0.5
    %v1124 = vadd.f32 %v1122, 0.5
    %v1125 = vadd.f32 %v1123, 0.5
    %v1126 = vsel %vm199, %v1120, %v1124
    %v1127 = vsel %vm200, %v1121, %v1125
    %v1128 = vmul.f32 %v1126, %v999
    %1130 = vrot.lane.b32.xlu0 %v1126, 64
    %v1131 = vpop.permute.xlu0 %1130
    %v1133 = vmul.f32 %v1126, %v1131
    %1135 = vrot.lane.b32.xlu0 %v1133, 32
    %v1136 = vpop.permute.xlu0 %1135
    %v1138 = vadd.f32 %v1128, %v1136
    %v1139 = vtanh.pop %v1138
    %1141 = vrot.lane.b32.xlu0 %v1139, 64
    %v1142 = vpop.permute.xlu0 %1141
    %v1144 = vmul.f32 %v1126, %v1142
    %v1145 = vmul.f32 %v1127, %v1016
    %1147 = vrot.lane.b32.xlu0 %v1127, 64
    %v1148 = vpop.permute.xlu0 %1147
    %v1150 = vmul.f32 %v1127, %v1148
    %1152 = vrot.lane.b32.xlu0 %v1150, 32
    %v1153 = vpop.permute.xlu0 %1152
    %v1155 = vadd.f32 %v1145, %v1153
    %v1156 = vtanh.pop %v1155
    %1158 = vrot.lane.b32.xlu0 %v1156, 64
    %v1159 = vpop.permute.xlu0 %1158
    %v1161 = vmul.f32 %v1127, %v1159
    %1163 = vrot.lane.b32.xlu0 %v1144, 32
    %v1164 = vpop.permute.xlu0 %1163
    %1167 = vrot.lane.b32.xlu0 %v1161, 64
    %v1168 = vpop.permute.xlu0 %1167
    %1170 = vrot.lane.b32.xlu0 %v1144, 96
    %v1171 = vpop.permute.xlu0 %1170
    %v1173 = vsel %vm209, %v1164, %v1168
    %v1174 = vsel %vm211, %v1173, %v1171
    %v1176 = vsel %vm224, %v1174, 0
    %1178 = vmatprep.subr.mxu0 %v60
    %1179 = vmatpush1.msra.mxu0 %v59
    %1180 = vmatprep.subr.mxu0 %v62
    %1181 = vmatpush1.msra.mxu0 %v61
    %1182 = vmatprep.subr.mxu0 %v64
    %1183 = vmatpush1.msra.mxu0 %v63
    %1184 = vmatprep.subr.mxu0 %v66
    %1185 = vmatpush1.msra.mxu0 %v65
    %1186 = vmatprep.subr.mxu0 %v68
    %1187 = vmatpush1.msra.mxu0 %v67
    %1188 = vmatprep.subr.mxu0 %v70
    %1189 = vmatpush1.msra.mxu0 %v69
    %1190 = vmatprep.subr.mxu0 %v72
    %1191 = vmatpush1.msra.mxu0 %v71
    %1192 = vmatprep.subr.mxu0 %v74
    %1193 = vmatpush1.msra.mxu0 %v73
    %1194 = vmatprep.subr.mxu0 %v76
    %1195 = vmatpush1.msra.mxu0 %v75
    %1196 = vmatprep.subr.mxu0 %v78
    %1197 = vmatpush1.msra.mxu0 %v77
    %1198 = vmatprep.subr.mxu0 %v80
    %1199 = vmatpush1.msra.mxu0 %v79
    %1200 = vmatprep.subr.mxu0 %v82
    %1201 = vmatpush1.msra.mxu0 %v81
    %1202 = vmatprep.subr.mxu0 0.0
    %1203 = vmatpush1.msra.mxu0 0.0
    %1204 = vmatprep.subr.mxu0 0.0
    %1205 = vmatpush1.msra.mxu0 0.0
    %1206 = vmatprep.subr.mxu0 0.0
    %1207 = vmatpush1.msra.mxu0 0.0
    %1208 = vmatprep.subr.mxu0 0.0
    %1209 = vmatpush1.msra.mxu0 0.0
    %1210 = vmatprep.subr.mxu0 0.0
    %1211 = vmatpush1.msra.mxu0 0.0
    %1212 = vmatprep.subr.mxu0 0.0
    %1213 = vmatpush1.msra.mxu0 0.0
    %1214 = vmatprep.subr.mxu0 0.0
    %1215 = vmatpush1.msra.mxu0 0.0
    %1216 = vmatprep.subr.mxu0 0.0
    %1217 = vmatpush1.msra.mxu0 0.0
    %1218 = vmatprep.subr.mxu0 0.0
    %1219 = vmatpush1.msra.mxu0 0.0
    %1220 = vmatprep.subr.mxu0 0.0
    %1221 = vmatpush1.msra.mxu0 0.0
    %1222 = vmatprep.subr.mxu0 0.0
    %1223 = vmatpush1.msra.mxu0 0.0
    %1224 = vmatprep.subr.mxu0 0.0
    %1225 = vmatpush1.msra.mxu0 0.0
    %1226 = vmatprep.subr.mxu0 0.0
    %1227 = vmatpush1.msra.mxu0 0.0
    %1228 = vmatprep.subr.mxu0 0.0
    %1229 = vmatpush1.msra.mxu0 0.0
    %1230 = vmatprep.subr.mxu0 0.0
    %1231 = vmatpush1.msra.mxu0 0.0
    %1232 = vmatprep.subr.mxu0 0.0
    %1233 = vmatpush1.msra.mxu0 0.0
    %1234 = vmatprep.subr.mxu0 0.0
    %1235 = vmatpush1.msra.mxu0 0.0
    %1236 = vmatprep.subr.mxu0 0.0
    %1237 = vmatpush1.msra.mxu0 0.0
    %1238 = vmatprep.subr.mxu0 0.0
    %1239 = vmatpush1.msra.mxu0 0.0
    %1240 = vmatprep.subr.mxu0 0.0
    %1241 = vmatpush1.msra.mxu0 0.0
    %1242 = vmatprep.mubr.f32.mxu0 0.0
    %1243 = vmatmul.mubr.f32.gmra.mrb[0].mxu0 %v1176
    %v1244 = vpop.f32.mrb[0].mxu0
    %v1245 = vadd.f32 %v217, %v1244
    %v1246 = vpop.f32.mrb[0].mxu0
    %v1247 = vadd.f32 %v221, %v1246
    %1248 = vdwg.mxu0
    %v1249 = vrot.slane %v164, 7
    %v1250 = vrot.slane %v166, 7
    %v1253 = vadd.f32 %v1245, %v1249
    %v1254 = vadd.f32 %v1247, %v1250
    %v1255 = vmul.f32 %v1253, 0.5
    %v1256 = vmul.f32 %v1254, 0.5
    %v1257 = vsel %vm199, %v1253, %v1255
    %v1258 = vsel %vm200, %v1254, %v1256
    %v1259 = vtanh.pop %v1257
    %v1260 = vtanh.pop %v1258
    %v1261 = vmul.f32 %v1259, 0.5
    %v1262 = vmul.f32 %v1260, 0.5
    %v1263 = vadd.f32 %v1261, 0.5
    %v1264 = vadd.f32 %v1262, 0.5
    %v1265 = vsel %vm199, %v1259, %v1263
    %v1266 = vsel %vm200, %v1260, %v1264
    %v1267 = vmul.f32 %v1265, %v1138
    %1269 = vrot.lane.b32.xlu0 %v1265, 64
    %v1270 = vpop.permute.xlu0 %1269
    %v1272 = vmul.f32 %v1265, %v1270
    %1274 = vrot.lane.b32.xlu0 %v1272, 32
    %v1275 = vpop.permute.xlu0 %1274
    %v1277 = vadd.f32 %v1267, %v1275
    %v1278 = vtanh.pop %v1277
    %1280 = vrot.lane.b32.xlu0 %v1278, 64
    %v1281 = vpop.permute.xlu0 %1280
    %v1283 = vmul.f32 %v1265, %v1281
    %v1284 = vmul.f32 %v1266, %v1155
    %1286 = vrot.lane.b32.xlu0 %v1266, 64
    %v1287 = vpop.permute.xlu0 %1286
    %v1289 = vmul.f32 %v1266, %v1287
    %1291 = vrot.lane.b32.xlu0 %v1289, 32
    %v1292 = vpop.permute.xlu0 %1291
    %v1294 = vadd.f32 %v1284, %v1292
    %v1295 = vtanh.pop %v1294
    %1297 = vrot.lane.b32.xlu0 %v1295, 64
    %v1298 = vpop.permute.xlu0 %1297
    %v1300 = vmul.f32 %v1266, %v1298
    %1302 = vrot.lane.b32.xlu0 %v1283, 32
    %v1303 = vpop.permute.xlu0 %1302
    %1306 = vrot.lane.b32.xlu0 %v1300, 64
    %v1307 = vpop.permute.xlu0 %1306
    %1309 = vrot.lane.b32.xlu0 %v1283, 96
    %v1310 = vpop.permute.xlu0 %1309
    %v1312 = vsel %vm209, %v1303, %v1307
    %v1313 = vsel %vm211, %v1312, %v1310
    %v1315 = vsel %vm224, %v1313, 0
    %1317 = vmatprep.subr.mxu0 %v60
    %1318 = vmatpush1.msra.mxu0 %v59
    %1319 = vmatprep.subr.mxu0 %v62
    %1320 = vmatpush1.msra.mxu0 %v61
    %1321 = vmatprep.subr.mxu0 %v64
    %1322 = vmatpush1.msra.mxu0 %v63
    %1323 = vmatprep.subr.mxu0 %v66
    %1324 = vmatpush1.msra.mxu0 %v65
    %1325 = vmatprep.subr.mxu0 %v68
    %1326 = vmatpush1.msra.mxu0 %v67
    %1327 = vmatprep.subr.mxu0 %v70
    %1328 = vmatpush1.msra.mxu0 %v69
    %1329 = vmatprep.subr.mxu0 %v72
    %1330 = vmatpush1.msra.mxu0 %v71
    %1331 = vmatprep.subr.mxu0 %v74
    %1332 = vmatpush1.msra.mxu0 %v73
    %1333 = vmatprep.subr.mxu0 %v76
    %1334 = vmatpush1.msra.mxu0 %v75
    %1335 = vmatprep.subr.mxu0 %v78
    %1336 = vmatpush1.msra.mxu0 %v77
    %1337 = vmatprep.subr.mxu0 %v80
    %1338 = vmatpush1.msra.mxu0 %v79
    %1339 = vmatprep.subr.mxu0 %v82
    %1340 = vmatpush1.msra.mxu0 %v81
    %1341 = vmatprep.subr.mxu0 0.0
    %1342 = vmatpush1.msra.mxu0 0.0
    %1343 = vmatprep.subr.mxu0 0.0
    %1344 = vmatpush1.msra.mxu0 0.0
    %1345 = vmatprep.subr.mxu0 0.0
    %1346 = vmatpush1.msra.mxu0 0.0
    %1347 = vmatprep.subr.mxu0 0.0
    %1348 = vmatpush1.msra.mxu0 0.0
    %1349 = vmatprep.subr.mxu0 0.0
    %1350 = vmatpush1.msra.mxu0 0.0
    %1351 = vmatprep.subr.mxu0 0.0
    %1352 = vmatpush1.msra.mxu0 0.0
    %1353 = vmatprep.subr.mxu0 0.0
    %1354 = vmatpush1.msra.mxu0 0.0
    %1355 = vmatprep.subr.mxu0 0.0
    %1356 = vmatpush1.msra.mxu0 0.0
    %1357 = vmatprep.subr.mxu0 0.0
    %1358 = vmatpush1.msra.mxu0 0.0
    %1359 = vmatprep.subr.mxu0 0.0
    %1360 = vmatpush1.msra.mxu0 0.0
    %1361 = vmatprep.subr.mxu0 0.0
    %1362 = vmatpush1.msra.mxu0 0.0
    %1363 = vmatprep.subr.mxu0 0.0
    %1364 = vmatpush1.msra.mxu0 0.0
    %1365 = vmatprep.subr.mxu0 0.0
    %1366 = vmatpush1.msra.mxu0 0.0
    %1367 = vmatprep.subr.mxu0 0.0
    %1368 = vmatpush1.msra.mxu0 0.0
    %1369 = vmatprep.subr.mxu0 0.0
    %1370 = vmatpush1.msra.mxu0 0.0
    %1371 = vmatprep.subr.mxu0 0.0
    %1372 = vmatpush1.msra.mxu0 0.0
    %1373 = vmatprep.subr.mxu0 0.0
    %1374 = vmatpush1.msra.mxu0 0.0
    %1375 = vmatprep.subr.mxu0 0.0
    %1376 = vmatpush1.msra.mxu0 0.0
    %1377 = vmatprep.subr.mxu0 0.0
    %1378 = vmatpush1.msra.mxu0 0.0
    %1379 = vmatprep.subr.mxu0 0.0
    %1380 = vmatpush1.msra.mxu0 0.0
    %1381 = vmatprep.mubr.f32.mxu0 0.0
    %1382 = vmatmul.mubr.f32.gmra.mrb[0].mxu0 %v1315
    %v1383 = vpop.f32.mrb[0].mxu0
    %v1384 = vpop.f32.mrb[0].mxu0
    %v1385 = vadd.f32 %v221, %v1384
    %1386 = vdwg.mxu0
    %v1387 = vadd.f32 %v1385, %v1250
    %v1388 = vmul.f32 %v1387, 0.5
    %v1389 = vsel %vm200, %v1387, %v1388
    %v1390 = vtanh.pop %v1389
    %v1391 = vmul.f32 %v1390, 0.5
    %v1392 = vadd.f32 %v1391, 0.5
    %v1393 = vsel %vm200, %v1390, %v1392
    %v1394 = vmul.f32 %v1393, %v1294
    %1396 = vrot.lane.b32.xlu0 %v1393, 64
    %v1397 = vpop.permute.xlu0 %1396
    %v1399 = vmul.f32 %v1393, %v1397
    %1401 = vrot.lane.b32.xlu0 %v1399, 32
    %v1402 = vpop.permute.xlu0 %1401
    %v1404 = vadd.f32 %v1394, %v1402
    %v1405 = vtanh.pop %v1404
    %1407 = vrot.lane.b32.xlu0 %v1405, 64
    %v1408 = vpop.permute.xlu0 %1407
    %v1410 = vmul.f32 %v1393, %v1408
    %v1411 = vld [vmem:[#allocation7 + $0x100] sm:$0xff]
    %v1412 = vld [vmem:[#allocation7 + $0x110] sm:$0xff]
    %v1413 = vld [vmem:[#allocation7 + $0x120] sm:$0xff]
    %v1414 = vld [vmem:[#allocation7 + $0x130] sm:$0xff]
    %v1415 = vld [vmem:[#allocation7 + $0x140] ss:$0 sm:$0xff]
    %1417 = vrot.lane.b32.xlu0 %v1410, 32
    %v1418 = vpop.permute.xlu0 %1417
    %v1419 = vsel %vm209, %v1418, 0
    %1421 = vmatprep.subr.mxu0 0.0
    %1422 = vmatpush1.msra.mxu0 %v1411
    %1423 = vmatprep.subr.mxu0 0.0
    %1424 = vmatpush1.msra.mxu0 %v1412
    %1425 = vmatprep.subr.mxu0 0.0
    %1426 = vmatpush1.msra.mxu0 %v1413
    %1427 = vmatprep.subr.mxu0 0.0
    %1428 = vmatpush1.msra.mxu0 %v1414
    %1429 = vmatprep.subr.mxu0 0.0
    %1430 = vmatpush1.msra.mxu0 0.0
    %1431 = vmatprep.subr.mxu0 0.0
    %1432 = vmatpush1.msra.mxu0 0.0
    %1433 = vmatprep.subr.mxu0 0.0
    %1434 = vmatpush1.msra.mxu0 0.0
    %1435 = vmatprep.subr.mxu0 0.0
    %1436 = vmatpush1.msra.mxu0 0.0
    %1437 = vmatprep.subr.mxu0 0.0
    %1438 = vmatpush1.msra.mxu0 0.0
    %1439 = vmatprep.subr.mxu0 0.0
    %1440 = vmatpush1.msra.mxu0 0.0
    %1441 = vmatprep.subr.mxu0 0.0
    %1442 = vmatpush1.msra.mxu0 0.0
    %1443 = vmatprep.subr.mxu0 0.0
    %1444 = vmatpush1.msra.mxu0 0.0
    %1445 = vmatprep.subr.mxu0 0.0
    %1446 = vmatpush1.msra.mxu0 0.0
    %1447 = vmatprep.subr.mxu0 0.0
    %1448 = vmatpush1.msra.mxu0 0.0
    %1449 = vmatprep.subr.mxu0 0.0
    %1450 = vmatpush1.msra.mxu0 0.0
    %1451 = vmatprep.subr.mxu0 0.0
    %1452 = vmatpush1.msra.mxu0 0.0
    %1453 = vmatprep.subr.mxu0 0.0
    %1454 = vmatpush1.msra.mxu0 0.0
    %1455 = vmatprep.subr.mxu0 0.0
    %1456 = vmatpush1.msra.mxu0 0.0
    %1457 = vmatprep.subr.mxu0 0.0
    %1458 = vmatpush1.msra.mxu0 0.0
    %1459 = vmatprep.subr.mxu0 0.0
    %1460 = vmatpush1.msra.mxu0 0.0
    %1461 = vmatprep.subr.mxu0 0.0
    %1462 = vmatpush1.msra.mxu0 0.0
    %1463 = vmatprep.subr.mxu0 0.0
    %1464 = vmatpush1.msra.mxu0 0.0
    %1465 = vmatprep.subr.mxu0 0.0
    %1466 = vmatpush1.msra.mxu0 0.0
    %1467 = vmatprep.subr.mxu0 0.0
    %1468 = vmatpush1.msra.mxu0 0.0
    %1469 = vmatprep.subr.mxu0 0.0
    %1470 = vmatpush1.msra.mxu0 0.0
    %1471 = vmatprep.subr.mxu0 0.0
    %1472 = vmatpush1.msra.mxu0 0.0
    %1473 = vmatprep.subr.mxu0 0.0
    %1474 = vmatpush1.msra.mxu0 0.0
    %1475 = vmatprep.subr.mxu0 0.0
    %1476 = vmatpush1.msra.mxu0 0.0
    %1477 = vmatprep.subr.mxu0 0.0
    %1478 = vmatpush1.msra.mxu0 0.0
    %1479 = vmatprep.subr.mxu0 0.0
    %1480 = vmatpush1.msra.mxu0 0.0
    %1481 = vmatprep.subr.mxu0 0.0
    %1482 = vmatpush1.msra.mxu0 0.0
    %1483 = vmatprep.subr.mxu0 0.0
    %1484 = vmatpush1.msra.mxu0 0.0
    %1485 = vmatprep.mubr.f32.mxu0 0.0
    %1486 = vmatmul.mubr.f32.gmra.mrb[0].mxu0 %v1419
    %v1487 = vpop.f32.mrb[0].mxu0
    %v1488 = vadd.f32 %v1415, %v1487
    %v1489 = vpop.f32.mrb[0].mxu0
    %1490 = vdwg.mxu0
    %v1491 = vxor.u32 %v1488, 2147483648
    %v1492 = vmul.f32 %v1491, 1.442695
    %v1493 = vpow.pop %v1492
    %v1494 = vadd.f32 %v1493, 1.0
    %v1495 = vrcp.pop %v1494
    %v1496 = vmul.f32 1.0, %v1495
    %1497 = vst [vmem:[#allocation8] sm:$0x1] %v1496
    // Predicated region
    $region26: #{tpu_custom_call.1} parent=1 // pred_check
      _
    $region27: #{tpu_custom_call.1} parent=1 // pred_check_branch
      %1499 = sbr.rel (0) target = $region29
    $region28: #{tpu_custom_call.1} parent=1 // pred_region
      %s1501 = ssub.s32 16, 16
      %1502 = vsyncadd [#allocation4], %s1501
      %s1504 = sshll.u32 [#allocation8], 4
      %s1505 = int_to_ptr.vmem [resolvable:$true] %s1504
      %1507 = dma.vmem_to_hbm [thread:$0]  %s1505, 16, %s3, [#allocation4]
    $region29: #{tpu_custom_call.1} parent=1 // pred_fallthru
      _
    // Predicated region
    $region30: #{tpu_custom_call.1} parent=1 // pred_check
      _
    $region31: #{tpu_custom_call.1} parent=1 // pred_check_branch
      %1509 = sbr.rel (0) target = $region33
    $region32: #{tpu_custom_call.1} parent=1 // pred_region
      %1510 = dma.done [#allocation4], 16
    $region33: #{tpu_custom_call.1} parent=1 // pred_fallthru
      _
    %1511 = vsyncpa [#allocation3], 1
    %1512 = vsyncpa [#allocation6], 1
    %1513 = vsyncpa [#allocation4], 1

</llo_original>
